<compile_context>
chip_gen: v7x
topology: tpu7x:2x2x1
jax: 0.10.0
libtpu: 0.0.40
codegen_flags: <defaults>
</compile_context>

<pallas_src>
import functools

import numpy as np
import jax
import jax.numpy as jnp
from jax import lax
from jax.experimental import pallas as pl
from jax.experimental.pallas import tpu as pltpu


def _round_up(x, m):
    return ((x + m - 1) // m) * m


# ----------------------------------------------------------------------------
# Fused kernel: upsample (ConvTranspose 2x2 s2) -> [skip|expanded] -> conv1 ->
# ReLU -> conv2 -> ReLU, all per batch element, all lane-dense (C, spatial).
#
# Coordinates (flat, row stride Wq = W + 2):
#   input buffers  : real pixel (h, w) at r = (h+2)*Wq + (w+2)
#   h1 activation  : real pixel (h, w) at p = (h+1)*Wq + (w+1)   (halo zeroed)
#   conv2 output   : real pixel (h, w) at q =  h   *Wq +  w      (2 wrap cols/row)
# ----------------------------------------------------------------------------
def _upblock_kernel(skip_ref, x_ref, mask_ref, wup_ref, s_ref, w1_ref, b1_ref,
                    w2_ref, b2_ref, o_ref, exp_sc, x1_sc, h1_sc, x2_sc,
                    *, Wq, P1, M2):
    C = o_ref.shape[1]

    # ---- expand_layers: ConvTranspose2d(k=2, s=2) + stride-2 interleave +
    # zero padding, fused as matmuls with per-parity scatter matrices.  The
    # bias rides on the appended ones-row of x, so it lands only on real
    # pixels and the padding halo of `expanded` stays exactly zero.
    x_aug = x_ref[0]                                    # (Cin+1, Hr*Wr), last row = 1
    exp_pad = jnp.zeros((C, exp_sc.shape[1]), jnp.float32)
    for d in range(4):                                  # (di, dj) output parity class
        y_d = jnp.dot(wup_ref[d], x_aug, preferred_element_type=jnp.float32)
        exp_pad = exp_pad + jnp.dot(y_d, s_ref[d],
                                    preferred_element_type=jnp.float32)
    exp_sc[...] = exp_pad                               # fully overwritten every step

    # ---- conv1 (3x3 over the virtual concat [skip | expanded]) + ReLU.
    # All 9 taps x 2 sources stacked along K -> ONE (C, 18C) x (18C, P1) dot.
    for dh in range(3):
        for dw in range(3):
            t = dh * 3 + dw
            s = dh * Wq + dw
            x1_sc[pl.ds(2 * C * t, C), :] = skip_ref[0, :, pl.ds(s, P1)]
            x1_sc[pl.ds(2 * C * t + C, C), :] = exp_sc[:, pl.ds(s, P1)]
    h1 = jnp.dot(w1_ref[...], x1_sc[...],
                 preferred_element_type=jnp.float32) + b1_ref[...]
    # halo mask -> the h1 ring becomes conv2's zero padding
    h1_sc[...] = jnp.maximum(h1, 0.0) * mask_ref[...]

    # ---- conv2 (3x3) + ReLU: ONE (C, 9C) x (9C, M2) dot ----
    for dh in range(3):
        for dw in range(3):
            t = dh * 3 + dw
            s = dh * Wq + dw
            x2_sc[pl.ds(C * t, C), :] = h1_sc[:, pl.ds(s, M2)]
    out = jnp.dot(w2_ref[...], x2_sc[...],
                  preferred_element_type=jnp.float32) + b2_ref[...]
    o_ref[0] = jnp.maximum(out, 0.0)


# ----------------------------------------------------------------------------
# UpBlock.forward (wrapper: only reshapes / tiny pads / weight re-layout).
# ----------------------------------------------------------------------------
def up_block_forward(params, reduced_nchw, maintained_nchw):
    N, Cin, Hr, Wr = reduced_nchw.shape
    Nc, C, H, W = maintained_nchw.shape
    assert Nc == N and (H, W) == (2 * Hr, 2 * Wr)

    Wq = W + 2                               # flat row stride (1 zero col each side)
    M2 = H * Wq                              # conv2 output cols (W real + 2 wrap / row)
    P1 = _round_up(M2 + 2 * Wq + 2, 128)     # h1 cols (lane-dense, covers conv2 taps)
    rows_in = -(-(P1 + 2 * Wq + 2) // Wq)    # padded input rows (2 top + bottom pad)
    Rin = rows_in * Wq
    bot = rows_in - (H + 2)

    f32 = jnp.float32

    # ---------------- layout-only glue (reshape / tiny pad) ----------------
    x_flat = reduced_nchw.reshape(N, Cin, Hr * Wr).astype(f32)
    x_aug = jnp.concatenate([x_flat, jnp.ones((N, 1, Hr * Wr), f32)], axis=1)
    skip_flat = jnp.pad(maintained_nchw.astype(f32),
                        ((0, 0), (0, 0), (2, bot), (2, 0))).reshape(N, C, Rin)

    # ---------------- weight / constant re-layout (trace time) -------------
    # ConvTranspose weight per output parity (di, dj), bias as extra column.
    wup = jnp.transpose(params["up_w"], (2, 3, 1, 0)).reshape(4, C, Cin)
    wup_aug = jnp.concatenate(
        [wup, jnp.broadcast_to(params["up_b"].reshape(1, C, 1), (4, C, 1))],
        axis=-1)                                           # (4, C, Cin+1)

    # Scatter matrices: reduced pixel (i, j) -> padded flat position of the
    # (2i+di, 2j+dj) upsampled pixel.  Shape-only constants.
    S_np = np.zeros((4, Hr * Wr, Rin), np.float32)
    for di in range(2):
        for dj in range(2):
            d = 2 * di + dj
            for i in range(Hr):
                for j in range(Wr):
                    r = (2 * i + di + 2) * Wq + (2 * j + dj + 2)
                    S_np[d, i * Wr + j, r] = 1.0
    S = jnp.asarray(S_np)

    # conv weights with taps stacked along K (matches the in-kernel stacking:
    # row = tap*2C + ic for conv1 with ic ordered [skip | expanded]).
    w1_stk = jnp.transpose(params["conv1_w"], (0, 2, 3, 1)).reshape(C, 9 * 2 * C)
    w2_stk = jnp.transpose(params["conv2_w"], (0, 2, 3, 1)).reshape(C, 9 * C)
    b1 = params["conv1_b"].reshape(C, 1)
    b2 = params["conv2_b"].reshape(C, 1)

    # halo mask in h1 (padded-flat) coordinates: 1 on real pixels, 0 elsewhere.
    p = np.arange(P1)
    row, col = p // Wq, p % Wq
    mask1 = jnp.asarray(((row >= 1) & (row <= H) & (col >= 1) & (col <= W))
                        .astype(np.float32).reshape(1, P1))

    kernel = functools.partial(_upblock_kernel, Wq=Wq, P1=P1, M2=M2)
    out_flat = pl.pallas_call(
        kernel,
        out_shape=jax.ShapeDtypeStruct((N, C, M2), f32),
        grid=(N,),
        in_specs=[
            pl.BlockSpec((1, C, Rin), lambda n: (n, 0, 0)),            # skip (padded flat)
            pl.BlockSpec((1, Cin + 1, Hr * Wr), lambda n: (n, 0, 0)),  # reduced + ones row
            pl.BlockSpec((1, P1), lambda n: (0, 0)),                   # h1 halo mask
            pl.BlockSpec((4, C, Cin + 1), lambda n: (0, 0, 0)),        # convT weight (+bias col)
            pl.BlockSpec((4, Hr * Wr, Rin), lambda n: (0, 0, 0)),      # scatter matrices
            pl.BlockSpec((C, 9 * 2 * C), lambda n: (0, 0)),            # conv1 weight (tap-stacked)
            pl.BlockSpec((C, 1), lambda n: (0, 0)),                    # conv1 bias
            pl.BlockSpec((C, 9 * C), lambda n: (0, 0)),                # conv2 weight (tap-stacked)
            pl.BlockSpec((C, 1), lambda n: (0, 0)),                    # conv2 bias
        ],
        out_specs=pl.BlockSpec((1, C, M2), lambda n: (n, 0, 0)),
        scratch_shapes=[
            pltpu.VMEM((C, Rin), f32),         # expanded + padded activation
            pltpu.VMEM((9 * 2 * C, P1), f32),  # stacked conv1 operand
            pltpu.VMEM((C, P1), f32),          # conv1 activation h1 (halo-zeroed)
            pltpu.VMEM((9 * C, M2), f32),      # stacked conv2 operand
        ],
        compiler_params=pltpu.CompilerParams(
            dimension_semantics=("parallel",)),
    )(skip_flat, x_aug, mask1, wup_aug, S, w1_stk, b1, w2_stk, b2)

    # drop the 2 wrap columns per row (layout glue only) -> NCHW output
    return out_flat.reshape(N, C, H, Wq)[:, :, :, :W]


# ----------------------------------------------------------------------------
# Pure-JAX reference (correctness check only).
# ----------------------------------------------------------------------------
def ref_forward(params, reduced_nchw, maintained_nchw):
    x = jnp.transpose(reduced_nchw, (0, 2, 3, 1))
    skip = jnp.transpose(maintained_nchw, (0, 2, 3, 1))
    Wt = params["up_w"]                                    # (Cin, Cout, 2, 2)
    y = jnp.einsum('nhwi,iojk->nhjwko', x, Wt)
    N, Hr, _, Wr, _, Cout = y.shape
    y = y.reshape(N, 2 * Hr, 2 * Wr, Cout) + params["up_b"]
    cat = jnp.concatenate([skip, y], axis=-1)

    def conv(z, w_oihw, b):
        w_hwio = jnp.transpose(w_oihw, (2, 3, 1, 0))
        out = lax.conv_general_dilated(
            z, w_hwio, (1, 1), 'SAME',
            dimension_numbers=('NHWC', 'HWIO', 'NHWC'))
        return jnp.maximum(out + b, 0.0)

    h = conv(cat, params["conv1_w"], params["conv1_b"])
    h = conv(h, params["conv2_w"], params["conv2_b"])
    return jnp.transpose(h, (0, 3, 1, 2))


if __name__ == "__main__":
    key = jax.random.PRNGKey(0)
    ks = jax.random.split(key, 8)
    in_ch, out_ch = 8, 4
    N, Hr, Wr = 2, 8, 8   # reduced spatial = 8 -> upsampled spatial = 16

    params = {
        "up_w":    0.1 * jax.random.normal(ks[0], (in_ch, out_ch, 2, 2), jnp.float32),
        "up_b":    0.1 * jax.random.normal(ks[1], (out_ch,), jnp.float32),
        "conv1_w": 0.1 * jax.random.normal(ks[2], (out_ch, 2 * out_ch, 3, 3), jnp.float32),
        "conv1_b": 0.1 * jax.random.normal(ks[3], (out_ch,), jnp.float32),
        "conv2_w": 0.1 * jax.random.normal(ks[4], (out_ch, out_ch, 3, 3), jnp.float32),
        "conv2_b": 0.1 * jax.random.normal(ks[5], (out_ch,), jnp.float32),
    }

    reduced = jax.random.normal(ks[6], (N, in_ch, Hr, Wr), jnp.float32)              # NCHW
    maintained = jax.random.normal(ks[7], (N, out_ch, 2 * Hr, 2 * Wr), jnp.float32)  # NCHW

    fwd = jax.jit(up_block_forward)
    out = jax.block_until_ready(fwd(params, reduced, maintained))
    ref = ref_forward(params, reduced, maintained)

    assert out.shape == (N, out_ch, 2 * Hr, 2 * Wr), out.shape
    if not jnp.allclose(out, ref, rtol=1e-4, atol=1e-4):
        raise AssertionError("Pallas UpBlock output does not match reference")
    print("KERNEL_OK")
</pallas_src>

<mosaic_0001>
module attributes {stable_mosaic.version = 11 : i64} {
  func.func @_upblock_kernel(%arg0: i32, %arg1: memref<1x4x432xf32, #tpu.memory_space<vmem>>, %arg2: memref<1x9x64xf32, #tpu.memory_space<vmem>>, %arg3: memref<1x384xf32, #tpu.memory_space<vmem>>, %arg4: memref<4x4x9xf32, #tpu.memory_space<vmem>>, %arg5: memref<4x64x432xf32, #tpu.memory_space<vmem>>, %arg6: memref<4x72xf32, #tpu.memory_space<vmem>>, %arg7: memref<4x1xf32, #tpu.memory_space<vmem>>, %arg8: memref<4x36xf32, #tpu.memory_space<vmem>>, %arg9: memref<4x1xf32, #tpu.memory_space<vmem>>, %arg10: memref<1x4x288xf32, #tpu.memory_space<vmem>>, %arg11: memref<4x432xf32, #tpu.memory_space<vmem>>, %arg12: memref<72x384xf32, #tpu.memory_space<vmem>>, %arg13: memref<4x384xf32, #tpu.memory_space<vmem>>, %arg14: memref<36x288xf32, #tpu.memory_space<vmem>>) attributes {dimension_semantics = [#tpu.dimension_semantics<parallel>], iteration_bounds = array<i64: 2>, scalar_prefetch = 0 : i64, scratch_operands = 4 : i64, tpu.core_type = #tpu.core_type<tc>, window_params = [{transform_indices = @transform_0, window_bounds = array<i64: 1, 4, 432>}, {transform_indices = @transform_1, window_bounds = array<i64: 1, 9, 64>}, {pipeline_mode = #tpu.pipeline_mode<synchronous>, transform_indices = @transform_2, window_bounds = array<i64: 1, 384>}, {pipeline_mode = #tpu.pipeline_mode<synchronous>, transform_indices = @transform_3, window_bounds = array<i64: 4, 4, 9>}, {pipeline_mode = #tpu.pipeline_mode<synchronous>, transform_indices = @transform_4, window_bounds = array<i64: 4, 64, 432>}, {pipeline_mode = #tpu.pipeline_mode<synchronous>, transform_indices = @transform_5, window_bounds = array<i64: 4, 72>}, {pipeline_mode = #tpu.pipeline_mode<synchronous>, transform_indices = @transform_6, window_bounds = array<i64: 4, 1>}, {pipeline_mode = #tpu.pipeline_mode<synchronous>, transform_indices = @transform_7, window_bounds = array<i64: 4, 36>}, {pipeline_mode = #tpu.pipeline_mode<synchronous>, transform_indices = @transform_8, window_bounds = array<i64: 4, 1>}, {transform_indices = @transform_9, window_bounds = array<i64: 1, 4, 288>}]} {
    %c0 = arith.constant 0 : index
    %c0_0 = arith.constant 0 : index
    %c0_1 = arith.constant 0 : index
    %0 = vector.load %arg2[%c0, %c0_0, %c0_1] : memref<1x9x64xf32, #tpu.memory_space<vmem>>, vector<1x9x64xf32>
    %1 = vector.shape_cast %0 : vector<1x9x64xf32> to vector<9x64xf32>
    %cst = arith.constant 0.000000e+00 : f32
    %2 = vector.broadcast %cst : f32 to vector<4x432xf32>
    %c0_2 = arith.constant 0 : index
    %c0_3 = arith.constant 0 : index
    %c0_4 = arith.constant 0 : index
    %3 = vector.load %arg4[%c0_2, %c0_3, %c0_4] : memref<4x4x9xf32, #tpu.memory_space<vmem>>, vector<1x4x9xf32>
    %4 = vector.shape_cast %3 : vector<1x4x9xf32> to vector<4x9xf32>
    %cst_5 = arith.constant dense<0.000000e+00> : vector<4x64xf32>
    %5 = tpu.matmul %4, %1, %cst_5 {dimension_numbers = #tpu.dot_dimension_numbers<[1], [0], [0], [1], [0, 0, 1, 1], [], []>} : vector<4x9xf32>, vector<9x64xf32>, vector<4x64xf32> -> vector<4x64xf32>
    %c0_6 = arith.constant 0 : index
    %c0_7 = arith.constant 0 : index
    %c0_8 = arith.constant 0 : index
    %6 = vector.load %arg5[%c0_6, %c0_7, %c0_8] : memref<4x64x432xf32, #tpu.memory_space<vmem>>, vector<1x64x432xf32>
    %7 = vector.shape_cast %6 : vector<1x64x432xf32> to vector<64x432xf32>
    %cst_9 = arith.constant dense<0.000000e+00> : vector<4x432xf32>
    %8 = tpu.matmul %5, %7, %cst_9 {dimension_numbers = #tpu.dot_dimension_numbers<[1], [0], [0], [1], [0, 0, 1, 1], [], []>} : vector<4x64xf32>, vector<64x432xf32>, vector<4x432xf32> -> vector<4x432xf32>
    %9 = arith.addf %2, %8 : vector<4x432xf32>
    %c1 = arith.constant 1 : index
    %c0_10 = arith.constant 0 : index
    %c0_11 = arith.constant 0 : index
    %10 = vector.load %arg4[%c1, %c0_10, %c0_11] : memref<4x4x9xf32, #tpu.memory_space<vmem>>, vector<1x4x9xf32>
    %11 = vector.shape_cast %10 : vector<1x4x9xf32> to vector<4x9xf32>
    %cst_12 = arith.constant dense<0.000000e+00> : vector<4x64xf32>
    %12 = tpu.matmul %11, %1, %cst_12 {dimension_numbers = #tpu.dot_dimension_numbers<[1], [0], [0], [1], [0, 0, 1, 1], [], []>} : vector<4x9xf32>, vector<9x64xf32>, vector<4x64xf32> -> vector<4x64xf32>
    %c1_13 = arith.constant 1 : index
    %c0_14 = arith.constant 0 : index
    %c0_15 = arith.constant 0 : index
    %13 = vector.load %arg5[%c1_13, %c0_14, %c0_15] : memref<4x64x432xf32, #tpu.memory_space<vmem>>, vector<1x64x432xf32>
    %14 = vector.shape_cast %13 : vector<1x64x432xf32> to vector<64x432xf32>
    %cst_16 = arith.constant dense<0.000000e+00> : vector<4x432xf32>
    %15 = tpu.matmul %12, %14, %cst_16 {dimension_numbers = #tpu.dot_dimension_numbers<[1], [0], [0], [1], [0, 0, 1, 1], [], []>} : vector<4x64xf32>, vector<64x432xf32>, vector<4x432xf32> -> vector<4x432xf32>
    %16 = arith.addf %9, %15 : vector<4x432xf32>
    %c2 = arith.constant 2 : index
    %c0_17 = arith.constant 0 : index
    %c0_18 = arith.constant 0 : index
    %17 = vector.load %arg4[%c2, %c0_17, %c0_18] : memref<4x4x9xf32, #tpu.memory_space<vmem>>, vector<1x4x9xf32>
    %18 = vector.shape_cast %17 : vector<1x4x9xf32> to vector<4x9xf32>
    %cst_19 = arith.constant dense<0.000000e+00> : vector<4x64xf32>
    %19 = tpu.matmul %18, %1, %cst_19 {dimension_numbers = #tpu.dot_dimension_numbers<[1], [0], [0], [1], [0, 0, 1, 1], [], []>} : vector<4x9xf32>, vector<9x64xf32>, vector<4x64xf32> -> vector<4x64xf32>
    %c2_20 = arith.constant 2 : index
    %c0_21 = arith.constant 0 : index
    %c0_22 = arith.constant 0 : index
    %20 = vector.load %arg5[%c2_20, %c0_21, %c0_22] : memref<4x64x432xf32, #tpu.memory_space<vmem>>, vector<1x64x432xf32>
    %21 = vector.shape_cast %20 : vector<1x64x432xf32> to vector<64x432xf32>
    %cst_23 = arith.constant dense<0.000000e+00> : vector<4x432xf32>
    %22 = tpu.matmul %19, %21, %cst_23 {dimension_numbers = #tpu.dot_dimension_numbers<[1], [0], [0], [1], [0, 0, 1, 1], [], []>} : vector<4x64xf32>, vector<64x432xf32>, vector<4x432xf32> -> vector<4x432xf32>
    %23 = arith.addf %16, %22 : vector<4x432xf32>
    %c3 = arith.constant 3 : index
    %c0_24 = arith.constant 0 : index
    %c0_25 = arith.constant 0 : index
    %24 = vector.load %arg4[%c3, %c0_24, %c0_25] : memref<4x4x9xf32, #tpu.memory_space<vmem>>, vector<1x4x9xf32>
    %25 = vector.shape_cast %24 : vector<1x4x9xf32> to vector<4x9xf32>
    %cst_26 = arith.constant dense<0.000000e+00> : vector<4x64xf32>
    %26 = tpu.matmul %25, %1, %cst_26 {dimension_numbers = #tpu.dot_dimension_numbers<[1], [0], [0], [1], [0, 0, 1, 1], [], []>} : vector<4x9xf32>, vector<9x64xf32>, vector<4x64xf32> -> vector<4x64xf32>
    %c3_27 = arith.constant 3 : index
    %c0_28 = arith.constant 0 : index
    %c0_29 = arith.constant 0 : index
    %27 = vector.load %arg5[%c3_27, %c0_28, %c0_29] : memref<4x64x432xf32, #tpu.memory_space<vmem>>, vector<1x64x432xf32>
    %28 = vector.shape_cast %27 : vector<1x64x432xf32> to vector<64x432xf32>
    %cst_30 = arith.constant dense<0.000000e+00> : vector<4x432xf32>
    %29 = tpu.matmul %26, %28, %cst_30 {dimension_numbers = #tpu.dot_dimension_numbers<[1], [0], [0], [1], [0, 0, 1, 1], [], []>} : vector<4x64xf32>, vector<64x432xf32>, vector<4x432xf32> -> vector<4x432xf32>
    %30 = arith.addf %23, %29 : vector<4x432xf32>
    %c0_31 = arith.constant 0 : index
    %c0_32 = arith.constant 0 : index
    %31 = vector.load %arg11[%c0_31, %c0_32] : memref<4x432xf32, #tpu.memory_space<vmem>>, vector<4x432xf32>
    tpu.vector_store %arg11[%c0_31, %c0_32], %30 {strides = array<i32>} : memref<4x432xf32, #tpu.memory_space<vmem>>, vector<4x432xf32>,
    %c0_33 = arith.constant 0 : index
    %c0_34 = arith.constant 0 : index
    %c0_35 = arith.constant 0 : index
    %32 = vector.load %arg1[%c0_33, %c0_34, %c0_35] : memref<1x4x432xf32, #tpu.memory_space<vmem>>, vector<1x4x384xf32>
    %33 = vector.shape_cast %32 : vector<1x4x384xf32> to vector<4x384xf32>
    %c0_36 = arith.constant 0 : index
    %c0_37 = arith.constant 0 : index
    %34 = vector.load %arg12[%c0_36, %c0_37] : memref<72x384xf32, #tpu.memory_space<vmem>>, vector<4x384xf32>
    tpu.vector_store %arg12[%c0_36, %c0_37], %33 {strides = array<i32>} : memref<72x384xf32, #tpu.memory_space<vmem>>, vector<4x384xf32>,
    %c0_38 = arith.constant 0 : index
    %c0_39 = arith.constant 0 : index
    %35 = vector.load %arg11[%c0_38, %c0_39] : memref<4x432xf32, #tpu.memory_space<vmem>>, vector<4x384xf32>
    %c4 = arith.constant 4 : index
    %c0_40 = arith.constant 0 : index
    %36 = vector.load %arg12[%c4, %c0_40] : memref<72x384xf32, #tpu.memory_space<vmem>>, vector<4x384xf32>
    tpu.vector_store %arg12[%c4, %c0_40], %35 {strides = array<i32>} : memref<72x384xf32, #tpu.memory_space<vmem>>, vector<4x384xf32>,
    %c0_41 = arith.constant 0 : index
    %c0_42 = arith.constant 0 : index
    %c1_43 = arith.constant 1 : index
    %37 = vector.load %arg1[%c0_41, %c0_42, %c1_43] : memref<1x4x432xf32, #tpu.memory_space<vmem>>, vector<1x4x384xf32>
    %38 = vector.shape_cast %37 : vector<1x4x384xf32> to vector<4x384xf32>
    %c8 = arith.constant 8 : index
    %c0_44 = arith.constant 0 : index
    %39 = vector.load %arg12[%c8, %c0_44] : memref<72x384xf32, #tpu.memory_space<vmem>>, vector<4x384xf32>
    tpu.vector_store %arg12[%c8, %c0_44], %38 {strides = array<i32>} : memref<72x384xf32, #tpu.memory_space<vmem>>, vector<4x384xf32>,
    %c0_45 = arith.constant 0 : index
    %c1_46 = arith.constant 1 : index
    %40 = vector.load %arg11[%c0_45, %c1_46] : memref<4x432xf32, #tpu.memory_space<vmem>>, vector<4x384xf32>
    %c12 = arith.constant 12 : index
    %c0_47 = arith.constant 0 : index
    %41 = vector.load %arg12[%c12, %c0_47] : memref<72x384xf32, #tpu.memory_space<vmem>>, vector<4x384xf32>
    tpu.vector_store %arg12[%c12, %c0_47], %40 {strides = array<i32>} : memref<72x384xf32, #tpu.memory_space<vmem>>, vector<4x384xf32>,
    %c0_48 = arith.constant 0 : index
    %c0_49 = arith.constant 0 : index
    %c2_50 = arith.constant 2 : index
    %42 = vector.load %arg1[%c0_48, %c0_49, %c2_50] : memref<1x4x432xf32, #tpu.memory_space<vmem>>, vector<1x4x384xf32>
    %43 = vector.shape_cast %42 : vector<1x4x384xf32> to vector<4x384xf32>
    %c16 = arith.constant 16 : index
    %c0_51 = arith.constant 0 : index
    %44 = vector.load %arg12[%c16, %c0_51] : memref<72x384xf32, #tpu.memory_space<vmem>>, vector<4x384xf32>
    tpu.vector_store %arg12[%c16, %c0_51], %43 {strides = array<i32>} : memref<72x384xf32, #tpu.memory_space<vmem>>, vector<4x384xf32>,
    %c0_52 = arith.constant 0 : index
    %c2_53 = arith.constant 2 : index
    %45 = vector.load %arg11[%c0_52, %c2_53] : memref<4x432xf32, #tpu.memory_space<vmem>>, vector<4x384xf32>
    %c20 = arith.constant 20 : index
    %c0_54 = arith.constant 0 : index
    %46 = vector.load %arg12[%c20, %c0_54] : memref<72x384xf32, #tpu.memory_space<vmem>>, vector<4x384xf32>
    tpu.vector_store %arg12[%c20, %c0_54], %45 {strides = array<i32>} : memref<72x384xf32, #tpu.memory_space<vmem>>, vector<4x384xf32>,
    %c0_55 = arith.constant 0 : index
    %c0_56 = arith.constant 0 : index
    %c18 = arith.constant 18 : index
    %47 = vector.load %arg1[%c0_55, %c0_56, %c18] : memref<1x4x432xf32, #tpu.memory_space<vmem>>, vector<1x4x384xf32>
    %48 = vector.shape_cast %47 : vector<1x4x384xf32> to vector<4x384xf32>
    %c24 = arith.constant 24 : index
    %c0_57 = arith.constant 0 : index
    %49 = vector.load %arg12[%c24, %c0_57] : memref<72x384xf32, #tpu.memory_space<vmem>>, vector<4x384xf32>
    tpu.vector_store %arg12[%c24, %c0_57], %48 {strides = array<i32>} : memref<72x384xf32, #tpu.memory_space<vmem>>, vector<4x384xf32>,
    %c0_58 = arith.constant 0 : index
    %c18_59 = arith.constant 18 : index
    %50 = vector.load %arg11[%c0_58, %c18_59] : memref<4x432xf32, #tpu.memory_space<vmem>>, vector<4x384xf32>
    %c28 = arith.constant 28 : index
    %c0_60 = arith.constant 0 : index
    %51 = vector.load %arg12[%c28, %c0_60] : memref<72x384xf32, #tpu.memory_space<vmem>>, vector<4x384xf32>
    tpu.vector_store %arg12[%c28, %c0_60], %50 {strides = array<i32>} : memref<72x384xf32, #tpu.memory_space<vmem>>, vector<4x384xf32>,
    %c0_61 = arith.constant 0 : index
    %c0_62 = arith.constant 0 : index
    %c19 = arith.constant 19 : index
    %52 = vector.load %arg1[%c0_61, %c0_62, %c19] : memref<1x4x432xf32, #tpu.memory_space<vmem>>, vector<1x4x384xf32>
    %53 = vector.shape_cast %52 : vector<1x4x384xf32> to vector<4x384xf32>
    %c32 = arith.constant 32 : index
    %c0_63 = arith.constant 0 : index
    %54 = vector.load %arg12[%c32, %c0_63] : memref<72x384xf32, #tpu.memory_space<vmem>>, vector<4x384xf32>
    tpu.vector_store %arg12[%c32, %c0_63], %53 {strides = array<i32>} : memref<72x384xf32, #tpu.memory_space<vmem>>, vector<4x384xf32>,
    %c0_64 = arith.constant 0 : index
    %c19_65 = arith.constant 19 : index
    %55 = vector.load %arg11[%c0_64, %c19_65] : memref<4x432xf32, #tpu.memory_space<vmem>>, vector<4x384xf32>
    %c36 = arith.constant 36 : index
    %c0_66 = arith.constant 0 : index
    %56 = vector.load %arg12[%c36, %c0_66] : memref<72x384xf32, #tpu.memory_space<vmem>>, vector<4x384xf32>
    tpu.vector_store %arg12[%c36, %c0_66], %55 {strides = array<i32>} : memref<72x384xf32, #tpu.memory_space<vmem>>, vector<4x384xf32>,
    %c0_67 = arith.constant 0 : index
    %c0_68 = arith.constant 0 : index
    %c20_69 = arith.constant 20 : index
    %57 = vector.load %arg1[%c0_67, %c0_68, %c20_69] : memref<1x4x432xf32, #tpu.memory_space<vmem>>, vector<1x4x384xf32>
    %58 = vector.shape_cast %57 : vector<1x4x384xf32> to vector<4x384xf32>
    %c40 = arith.constant 40 : index
    %c0_70 = arith.constant 0 : index
    %59 = vector.load %arg12[%c40, %c0_70] : memref<72x384xf32, #tpu.memory_space<vmem>>, vector<4x384xf32>
    tpu.vector_store %arg12[%c40, %c0_70], %58 {strides = array<i32>} : memref<72x384xf32, #tpu.memory_space<vmem>>, vector<4x384xf32>,
    %c0_71 = arith.constant 0 : index
    %c20_72 = arith.constant 20 : index
    %60 = vector.load %arg11[%c0_71, %c20_72] : memref<4x432xf32, #tpu.memory_space<vmem>>, vector<4x384xf32>
    %c44 = arith.constant 44 : index
    %c0_73 = arith.constant 0 : index
    %61 = vector.load %arg12[%c44, %c0_73] : memref<72x384xf32, #tpu.memory_space<vmem>>, vector<4x384xf32>
    tpu.vector_store %arg12[%c44, %c0_73], %60 {strides = array<i32>} : memref<72x384xf32, #tpu.memory_space<vmem>>, vector<4x384xf32>,
    %c0_74 = arith.constant 0 : index
    %c0_75 = arith.constant 0 : index
    %c36_76 = arith.constant 36 : index
    %62 = vector.load %arg1[%c0_74, %c0_75, %c36_76] : memref<1x4x432xf32, #tpu.memory_space<vmem>>, vector<1x4x384xf32>
    %63 = vector.shape_cast %62 : vector<1x4x384xf32> to vector<4x384xf32>
    %c48 = arith.constant 48 : index
    %c0_77 = arith.constant 0 : index
    %64 = vector.load %arg12[%c48, %c0_77] : memref<72x384xf32, #tpu.memory_space<vmem>>, vector<4x384xf32>
    tpu.vector_store %arg12[%c48, %c0_77], %63 {strides = array<i32>} : memref<72x384xf32, #tpu.memory_space<vmem>>, vector<4x384xf32>,
    %c0_78 = arith.constant 0 : index
    %c36_79 = arith.constant 36 : index
    %65 = vector.load %arg11[%c0_78, %c36_79] : memref<4x432xf32, #tpu.memory_space<vmem>>, vector<4x384xf32>
    %c52 = arith.constant 52 : index
    %c0_80 = arith.constant 0 : index
    %66 = vector.load %arg12[%c52, %c0_80] : memref<72x384xf32, #tpu.memory_space<vmem>>, vector<4x384xf32>
    tpu.vector_store %arg12[%c52, %c0_80], %65 {strides = array<i32>} : memref<72x384xf32, #tpu.memory_space<vmem>>, vector<4x384xf32>,
    %c0_81 = arith.constant 0 : index
    %c0_82 = arith.constant 0 : index
    %c37 = arith.constant 37 : index
    %67 = vector.load %arg1[%c0_81, %c0_82, %c37] : memref<1x4x432xf32, #tpu.memory_space<vmem>>, vector<1x4x384xf32>
    %68 = vector.shape_cast %67 : vector<1x4x384xf32> to vector<4x384xf32>
    %c56 = arith.constant 56 : index
    %c0_83 = arith.constant 0 : index
    %69 = vector.load %arg12[%c56, %c0_83] : memref<72x384xf32, #tpu.memory_space<vmem>>, vector<4x384xf32>
    tpu.vector_store %arg12[%c56, %c0_83], %68 {strides = array<i32>} : memref<72x384xf32, #tpu.memory_space<vmem>>, vector<4x384xf32>,
    %c0_84 = arith.constant 0 : index
    %c37_85 = arith.constant 37 : index
    %70 = vector.load %arg11[%c0_84, %c37_85] : memref<4x432xf32, #tpu.memory_space<vmem>>, vector<4x384xf32>
    %c60 = arith.constant 60 : index
    %c0_86 = arith.constant 0 : index
    %71 = vector.load %arg12[%c60, %c0_86] : memref<72x384xf32, #tpu.memory_space<vmem>>, vector<4x384xf32>
    tpu.vector_store %arg12[%c60, %c0_86], %70 {strides = array<i32>} : memref<72x384xf32, #tpu.memory_space<vmem>>, vector<4x384xf32>,
    %c0_87 = arith.constant 0 : index
    %c0_88 = arith.constant 0 : index
    %c38 = arith.constant 38 : index
    %72 = vector.load %arg1[%c0_87, %c0_88, %c38] : memref<1x4x432xf32, #tpu.memory_space<vmem>>, vector<1x4x384xf32>
    %73 = vector.shape_cast %72 : vector<1x4x384xf32> to vector<4x384xf32>
    %c64 = arith.constant 64 : index
    %c0_89 = arith.constant 0 : index
    %74 = vector.load %arg12[%c64, %c0_89] : memref<72x384xf32, #tpu.memory_space<vmem>>, vector<4x384xf32>
    tpu.vector_store %arg12[%c64, %c0_89], %73 {strides = array<i32>} : memref<72x384xf32, #tpu.memory_space<vmem>>, vector<4x384xf32>,
    %c0_90 = arith.constant 0 : index
    %c38_91 = arith.constant 38 : index
    %75 = vector.load %arg11[%c0_90, %c38_91] : memref<4x432xf32, #tpu.memory_space<vmem>>, vector<4x384xf32>
    %c68 = arith.constant 68 : index
    %c0_92 = arith.constant 0 : index
    %76 = vector.load %arg12[%c68, %c0_92] : memref<72x384xf32, #tpu.memory_space<vmem>>, vector<4x384xf32>
    tpu.vector_store %arg12[%c68, %c0_92], %75 {strides = array<i32>} : memref<72x384xf32, #tpu.memory_space<vmem>>, vector<4x384xf32>,
    %c0_93 = arith.constant 0 : index
    %c0_94 = arith.constant 0 : index
    %77 = vector.load %arg6[%c0_93, %c0_94] : memref<4x72xf32, #tpu.memory_space<vmem>>, vector<4x72xf32>
    %c0_95 = arith.constant 0 : index
    %c0_96 = arith.constant 0 : index
    %78 = vector.load %arg12[%c0_95, %c0_96] : memref<72x384xf32, #tpu.memory_space<vmem>>, vector<72x384xf32>
    %cst_97 = arith.constant dense<0.000000e+00> : vector<4x384xf32>
    %79 = tpu.matmul %77, %78, %cst_97 {dimension_numbers = #tpu.dot_dimension_numbers<[1], [0], [0], [1], [0, 0, 1, 1], [], []>} : vector<4x72xf32>, vector<72x384xf32>, vector<4x384xf32> -> vector<4x384xf32>
    %c0_98 = arith.constant 0 : index
    %c0_99 = arith.constant 0 : index
    %80 = vector.load %arg7[%c0_98, %c0_99] : memref<4x1xf32, #tpu.memory_space<vmem>>, vector<4x1xf32>
    %81 = vector.broadcast %80 : vector<4x1xf32> to vector<4x384xf32>
    %82 = arith.addf %79, %81 : vector<4x384xf32>
    %cst_100 = arith.constant 0.000000e+00 : f32
    %83 = vector.broadcast %cst_100 : f32 to vector<4x384xf32>
    %84 = arith.maximumf %82, %83 : vector<4x384xf32>
    %c0_101 = arith.constant 0 : index
    %c0_102 = arith.constant 0 : index
    %85 = vector.load %arg3[%c0_101, %c0_102] : memref<1x384xf32, #tpu.memory_space<vmem>>, vector<1x384xf32>
    %86 = vector.broadcast %85 : vector<1x384xf32> to vector<4x384xf32>
    %87 = arith.mulf %84, %86 : vector<4x384xf32>
    %c0_103 = arith.constant 0 : index
    %c0_104 = arith.constant 0 : index
    %88 = vector.load %arg13[%c0_103, %c0_104] : memref<4x384xf32, #tpu.memory_space<vmem>>, vector<4x384xf32>
    tpu.vector_store %arg13[%c0_103, %c0_104], %87 {strides = array<i32>} : memref<4x384xf32, #tpu.memory_space<vmem>>, vector<4x384xf32>,
    %c0_105 = arith.constant 0 : index
    %c0_106 = arith.constant 0 : index
    %89 = vector.load %arg13[%c0_105, %c0_106] : memref<4x384xf32, #tpu.memory_space<vmem>>, vector<4x288xf32>
    %c0_107 = arith.constant 0 : index
    %c0_108 = arith.constant 0 : index
    %90 = vector.load %arg14[%c0_107, %c0_108] : memref<36x288xf32, #tpu.memory_space<vmem>>, vector<4x288xf32>
    tpu.vector_store %arg14[%c0_107, %c0_108], %89 {strides = array<i32>} : memref<36x288xf32, #tpu.memory_space<vmem>>, vector<4x288xf32>,
    %c0_109 = arith.constant 0 : index
    %c1_110 = arith.constant 1 : index
    %91 = vector.load %arg13[%c0_109, %c1_110] : memref<4x384xf32, #tpu.memory_space<vmem>>, vector<4x288xf32>
    %c4_111 = arith.constant 4 : index
    %c0_112 = arith.constant 0 : index
    %92 = vector.load %arg14[%c4_111, %c0_112] : memref<36x288xf32, #tpu.memory_space<vmem>>, vector<4x288xf32>
    tpu.vector_store %arg14[%c4_111, %c0_112], %91 {strides = array<i32>} : memref<36x288xf32, #tpu.memory_space<vmem>>, vector<4x288xf32>,
    %c0_113 = arith.constant 0 : index
    %c2_114 = arith.constant 2 : index
    %93 = vector.load %arg13[%c0_113, %c2_114] : memref<4x384xf32, #tpu.memory_space<vmem>>, vector<4x288xf32>
    %c8_115 = arith.constant 8 : index
    %c0_116 = arith.constant 0 : index
    %94 = vector.load %arg14[%c8_115, %c0_116] : memref<36x288xf32, #tpu.memory_space<vmem>>, vector<4x288xf32>
    tpu.vector_store %arg14[%c8_115, %c0_116], %93 {strides = array<i32>} : memref<36x288xf32, #tpu.memory_space<vmem>>, vector<4x288xf32>,
    %c0_117 = arith.constant 0 : index
    %c18_118 = arith.constant 18 : index
    %95 = vector.load %arg13[%c0_117, %c18_118] : memref<4x384xf32, #tpu.memory_space<vmem>>, vector<4x288xf32>
    %c12_119 = arith.constant 12 : index
    %c0_120 = arith.constant 0 : index
    %96 = vector.load %arg14[%c12_119, %c0_120] : memref<36x288xf32, #tpu.memory_space<vmem>>, vector<4x288xf32>
    tpu.vector_store %arg14[%c12_119, %c0_120], %95 {strides = array<i32>} : memref<36x288xf32, #tpu.memory_space<vmem>>, vector<4x288xf32>,
    %c0_121 = arith.constant 0 : index
    %c19_122 = arith.constant 19 : index
    %97 = vector.load %arg13[%c0_121, %c19_122] : memref<4x384xf32, #tpu.memory_space<vmem>>, vector<4x288xf32>
    %c16_123 = arith.constant 16 : index
    %c0_124 = arith.constant 0 : index
    %98 = vector.load %arg14[%c16_123, %c0_124] : memref<36x288xf32, #tpu.memory_space<vmem>>, vector<4x288xf32>
    tpu.vector_store %arg14[%c16_123, %c0_124], %97 {strides = array<i32>} : memref<36x288xf32, #tpu.memory_space<vmem>>, vector<4x288xf32>,
    %c0_125 = arith.constant 0 : index
    %c20_126 = arith.constant 20 : index
    %99 = vector.load %arg13[%c0_125, %c20_126] : memref<4x384xf32, #tpu.memory_space<vmem>>, vector<4x288xf32>
    %c20_127 = arith.constant 20 : index
    %c0_128 = arith.constant 0 : index
    %100 = vector.load %arg14[%c20_127, %c0_128] : memref<36x288xf32, #tpu.memory_space<vmem>>, vector<4x288xf32>
    tpu.vector_store %arg14[%c20_127, %c0_128], %99 {strides = array<i32>} : memref<36x288xf32, #tpu.memory_space<vmem>>, vector<4x288xf32>,
    %c0_129 = arith.constant 0 : index
    %c36_130 = arith.constant 36 : index
    %101 = vector.load %arg13[%c0_129, %c36_130] : memref<4x384xf32, #tpu.memory_space<vmem>>, vector<4x288xf32>
    %c24_131 = arith.constant 24 : index
    %c0_132 = arith.constant 0 : index
    %102 = vector.load %arg14[%c24_131, %c0_132] : memref<36x288xf32, #tpu.memory_space<vmem>>, vector<4x288xf32>
    tpu.vector_store %arg14[%c24_131, %c0_132], %101 {strides = array<i32>} : memref<36x288xf32, #tpu.memory_space<vmem>>, vector<4x288xf32>,
    %c0_133 = arith.constant 0 : index
    %c37_134 = arith.constant 37 : index
    %103 = vector.load %arg13[%c0_133, %c37_134] : memref<4x384xf32, #tpu.memory_space<vmem>>, vector<4x288xf32>
    %c28_135 = arith.constant 28 : index
    %c0_136 = arith.constant 0 : index
    %104 = vector.load %arg14[%c28_135, %c0_136] : memref<36x288xf32, #tpu.memory_space<vmem>>, vector<4x288xf32>
    tpu.vector_store %arg14[%c28_135, %c0_136], %103 {strides = array<i32>} : memref<36x288xf32, #tpu.memory_space<vmem>>, vector<4x288xf32>,
    %c0_137 = arith.constant 0 : index
    %c38_138 = arith.constant 38 : index
    %105 = vector.load %arg13[%c0_137, %c38_138] : memref<4x384xf32, #tpu.memory_space<vmem>>, vector<4x288xf32>
    %c32_139 = arith.constant 32 : index
    %c0_140 = arith.constant 0 : index
    %106 = vector.load %arg14[%c32_139, %c0_140] : memref<36x288xf32, #tpu.memory_space<vmem>>, vector<4x288xf32>
    tpu.vector_store %arg14[%c32_139, %c0_140], %105 {strides = array<i32>} : memref<36x288xf32, #tpu.memory_space<vmem>>, vector<4x288xf32>,
    %c0_141 = arith.constant 0 : index
    %c0_142 = arith.constant 0 : index
    %107 = vector.load %arg8[%c0_141, %c0_142] : memref<4x36xf32, #tpu.memory_space<vmem>>, vector<4x36xf32>
    %c0_143 = arith.constant 0 : index
    %c0_144 = arith.constant 0 : index
    %108 = vector.load %arg14[%c0_143, %c0_144] : memref<36x288xf32, #tpu.memory_space<vmem>>, vector<36x288xf32>
    %cst_145 = arith.constant dense<0.000000e+00> : vector<4x288xf32>
    %109 = tpu.matmul %107, %108, %cst_145 {dimension_numbers = #tpu.dot_dimension_numbers<[1], [0], [0], [1], [0, 0, 1, 1], [], []>} : vector<4x36xf32>, vector<36x288xf32>, vector<4x288xf32> -> vector<4x288xf32>
    %c0_146 = arith.constant 0 : index
    %c0_147 = arith.constant 0 : index
    %110 = vector.load %arg9[%c0_146, %c0_147] : memref<4x1xf32, #tpu.memory_space<vmem>>, vector<4x1xf32>
    %111 = vector.broadcast %110 : vector<4x1xf32> to vector<4x288xf32>
    %112 = arith.addf %109, %111 : vector<4x288xf32>
    %cst_148 = arith.constant 0.000000e+00 : f32
    %113 = vector.broadcast %cst_148 : f32 to vector<4x288xf32>
    %114 = arith.maximumf %112, %113 : vector<4x288xf32>
    %c0_149 = arith.constant 0 : index
    %c0_150 = arith.constant 0 : index
    %c0_151 = arith.constant 0 : index
    %115 = vector.load %arg10[%c0_149, %c0_150, %c0_151] : memref<1x4x288xf32, #tpu.memory_space<vmem>>, vector<1x4x288xf32>
    %116 = vector.shape_cast %115 : vector<1x4x288xf32> to vector<4x288xf32>
    %117 = vector.shape_cast %114 : vector<4x288xf32> to vector<1x4x288xf32>
    tpu.vector_store %arg10[%c0_149, %c0_150, %c0_151], %117 {strides = array<i32>} : memref<1x4x288xf32, #tpu.memory_space<vmem>>, vector<1x4x288xf32>,
    return
  }
  func.func @transform_0(%arg0: i32) -> (i32, i32, i32) {
    %c0_i32 = arith.constant 0 : i32
    %c0_i32_0 = arith.constant 0 : i32
    %c0_i32_1 = arith.constant 0 : i32
    return %arg0, %c0_i32, %c0_i32_0 : i32, i32, i32
  }
  func.func @transform_1(%arg0: i32) -> (i32, i32, i32) {
    %c0_i32 = arith.constant 0 : i32
    %c0_i32_0 = arith.constant 0 : i32
    %c0_i32_1 = arith.constant 0 : i32
    return %arg0, %c0_i32, %c0_i32_0 : i32, i32, i32
  }
  func.func @transform_2(%arg0: i32) -> (i32, i32) {
    %c0_i32 = arith.constant 0 : i32
    %c0_i32_0 = arith.constant 0 : i32
    %c0_i32_1 = arith.constant 0 : i32
    return %c0_i32, %c0_i32_0 : i32, i32
  }
  func.func @transform_3(%arg0: i32) -> (i32, i32, i32) {
    %c0_i32 = arith.constant 0 : i32
    %c0_i32_0 = arith.constant 0 : i32
    %c0_i32_1 = arith.constant 0 : i32
    %c0_i32_2 = arith.constant 0 : i32
    return %c0_i32, %c0_i32_0, %c0_i32_1 : i32, i32, i32
  }
  func.func @transform_4(%arg0: i32) -> (i32, i32, i32) {
    %c0_i32 = arith.constant 0 : i32
    %c0_i32_0 = arith.constant 0 : i32
    %c0_i32_1 = arith.constant 0 : i32
    %c0_i32_2 = arith.constant 0 : i32
    return %c0_i32, %c0_i32_0, %c0_i32_1 : i32, i32, i32
  }
  func.func @transform_5(%arg0: i32) -> (i32, i32) {
    %c0_i32 = arith.constant 0 : i32
    %c0_i32_0 = arith.constant 0 : i32
    %c0_i32_1 = arith.constant 0 : i32
    return %c0_i32, %c0_i32_0 : i32, i32
  }
  func.func @transform_6(%arg0: i32) -> (i32, i32) {
    %c0_i32 = arith.constant 0 : i32
    %c0_i32_0 = arith.constant 0 : i32
    %c0_i32_1 = arith.constant 0 : i32
    return %c0_i32, %c0_i32_0 : i32, i32
  }
  func.func @transform_7(%arg0: i32) -> (i32, i32) {
    %c0_i32 = arith.constant 0 : i32
    %c0_i32_0 = arith.constant 0 : i32
    %c0_i32_1 = arith.constant 0 : i32
    return %c0_i32, %c0_i32_0 : i32, i32
  }
  func.func @transform_8(%arg0: i32) -> (i32, i32) {
    %c0_i32 = arith.constant 0 : i32
    %c0_i32_0 = arith.constant 0 : i32
    %c0_i32_1 = arith.constant 0 : i32
    return %c0_i32, %c0_i32_0 : i32, i32
  }
  func.func @transform_9(%arg0: i32) -> (i32, i32, i32) {
    %c0_i32 = arith.constant 0 : i32
    %c0_i32_0 = arith.constant 0 : i32
    %c0_i32_1 = arith.constant 0 : i32
    return %arg0, %c0_i32, %c0_i32_0 : i32, i32, i32
  }
}

</mosaic_0001>

<llo_original>
// kernel: up_block_forward.1
$region0: #{up_block_forward.1}
  #allocation0 [shape = 'u32[]', space=smem, size = 0x4, offset = 0x4, fixed_abs, tag = 'smem constant byte address 0x4 - core index']
  #allocation1 [shape = 'u32[144,128]{1,0:T(1,128)}', space=vmem, size = 0x12000, scoped, tag = 'internal scratch']
  #allocation2 [shape = 'f32[4,432]{1,0:T(4,128)}', space=vmem, size = 0x2000, scoped, tag = 'scratch operand']
  #allocation3 [shape = 'f32[72,384]{1,0:T(8,128)}', space=vmem, size = 0x1b000, scoped, tag = 'scratch operand']
  #allocation4 [shape = 'f32[4,384]{1,0:T(4,128)}', space=vmem, size = 0x1800, scoped, tag = 'scratch operand']
  #allocation5 [shape = 'f32[36,288]{1,0:T(8,128)}', space=vmem, size = 0xf000, scoped, tag = 'scratch operand']
  %s0 = inlined_call_operand.vmem [shape: f32[2,4,432], index: 0, kind: input, shape index: {}]
  %s1 = inlined_call_operand.vmem [shape: f32[2,9,64], index: 1, kind: input, shape index: {}]
  %s2 = inlined_call_operand.vmem [shape: f32[1,384], index: 2, kind: input, shape index: {}]
  %s3 = inlined_call_operand.vmem [shape: f32[4,4,9], index: 3, kind: input, shape index: {}]
  %s4 = inlined_call_operand.vmem [shape: f32[4,64,432], index: 4, kind: input, shape index: {}]
  %s5 = inlined_call_operand.vmem [shape: f32[4,72], index: 5, kind: input, shape index: {}]
  %s6 = inlined_call_operand.vmem [shape: f32[4,1], index: 6, kind: input, shape index: {}]
  %s7 = inlined_call_operand.vmem [shape: f32[4,36], index: 7, kind: input, shape index: {}]
  %s8 = inlined_call_operand.vmem [shape: f32[4,1], index: 8, kind: input, shape index: {}]
  %s9 = inlined_call_operand.vmem [shape: f32[2,4,288], index: 9, kind: output, shape index: {}]
  %s10 = sld [smem:[#allocation0]]
  $region69: #{up_block_forward.1} parent=0
    _
  %s12 = ssub.s32 1, %s10
  %s13 = scalar_select 0, %s12, %s10
  loop: start=0, step=1, limit=4
  $region2: #{up_block_forward.1} parent=0 // loop_pre_header
    _
  $region3: #{up_block_forward.1} parent=0 // loop_header
    %s15 = sphi 0, %s19
    %p16 = scmp.ge.s32.totalorder %s15, 4
    %s25 = sphi 0, %s27
    %s28 = sphi 0, %s25
    %s29 = sphi 0, %s28
    %s45 = sphi 0, %s29
    %s51 = sphi 0, %s53
    %s54 = sphi 0, %s51
    %s55 = sphi 0, %s54
    %s71 = sphi 0, %s55
    %s75 = sphi 0, %s75
    %s77 = sphi 0, %s75
    %s78 = sphi 0, %s77
    %s92 = sphi 0, %s78
    %s96 = sphi 0, %s96
    %s98 = sphi 0, %s96
    %s99 = sphi 0, %s98
    %s113 = sphi 0, %s99
    %s117 = sphi 0, %s117
    %s119 = sphi 0, %s117
    %s120 = sphi 0, %s119
    %s134 = sphi 0, %s120
    %s138 = sphi 0, %s138
    %s140 = sphi 0, %s138
    %s141 = sphi 0, %s140
    %s155 = sphi 0, %s141
    %s159 = sphi 0, %s159
    %s161 = sphi 0, %s159
    %s162 = sphi 0, %s161
    %s176 = sphi 0, %s162
    %s180 = sphi 0, %s180
    %s182 = sphi 0, %s180
    %s183 = sphi 0, %s182
    %s197 = sphi 0, %s183
    %s201 = sphi 0, %s201
    %s203 = sphi 0, %s201
    %s204 = sphi 0, %s203
    %s218 = sphi 0, %s204
    %s224 = sphi 0, %s226
    %s227 = sphi 0, %s224
    %s228 = sphi 0, %s227
    %s244 = sphi 0, %s228
  $region4: #{up_block_forward.1} parent=0 // loop_header_branch
    %18 = sbr.rel (%p16) target = $region8
  $region5: #{up_block_forward.1} parent=0 // loop_body
    %s20 = ssub.s32 %s15, 1
    %s21 = ssub.s32 %s15, 2
    %s22 = sadd.s32 %s15, 1
    %s23 = ssub.s32 %s15, %s22
    %p24 = scmp.eq.s32.totalorder %s23, 0
    %s26 = sadd.s32 %s25, 1
    %s27 = scalar_select %p24, %s25, %s26
    %p30 = pneg %p24
    %p31 = scmp.eq.s32.totalorder %s15, 1
    %p32 = por %p30, %p31
    %p33 = scmp.ne.s32.totalorder %s25, %s28
    %p34 = scmp.eq.s32.totalorder %s15, 0
    %p35 = por %p33, %p34
    %p36 = scmp.ne.s32.totalorder %s25, %s28
    %p37 = scmp.eq.s32.totalorder %s20, 1
    %p38 = por %p36, %p37
    %p39 = scmp.ne.s32.totalorder %s28, %s29
    %p40 = scmp.eq.s32.totalorder %s20, 0
    %p41 = por %p39, %p40
    %p42 = scmp.ne.s32.totalorder %s28, %s29
    %p43 = scmp.eq.s32.totalorder %s21, 1
    %p44 = por %p42, %p43
    %p46 = scmp.ne.s32.totalorder %s29, %s45
    %p47 = scmp.eq.s32.totalorder %s21, 0
    %p48 = por %p46, %p47
    %s49 = ssub.s32 %s15, %s22
    %p50 = scmp.eq.s32.totalorder %s49, 0
    %s52 = sadd.s32 %s51, 1
    %s53 = scalar_select %p50, %s51, %s52
    %p56 = pneg %p50
    %p57 = scmp.eq.s32.totalorder %s15, 1
    %p58 = por %p56, %p57
    %p59 = scmp.ne.s32.totalorder %s51, %s54
    %p60 = scmp.eq.s32.totalorder %s15, 0
    %p61 = por %p59, %p60
    %p62 = scmp.ne.s32.totalorder %s51, %s54
    %p63 = scmp.eq.s32.totalorder %s20, 1
    %p64 = por %p62, %p63
    %p65 = scmp.ne.s32.totalorder %s54, %s55
    %p66 = scmp.eq.s32.totalorder %s20, 0
    %p67 = por %p65, %p66
    %p68 = scmp.ne.s32.totalorder %s54, %s55
    %p69 = scmp.eq.s32.totalorder %s21, 1
    %p70 = por %p68, %p69
    %p72 = scmp.ne.s32.totalorder %s55, %s71
    %p73 = scmp.eq.s32.totalorder %s21, 0
    %p74 = por %p72, %p73
    %s76 = sadd.s32 %s75, 1
    %p79 = scmp.eq.s32.totalorder %s15, 1
    %p80 = scmp.ne.s32.totalorder %s75, %s77
    %p81 = scmp.eq.s32.totalorder %s15, 0
    %p82 = por %p80, %p81
    %p83 = scmp.ne.s32.totalorder %s75, %s77
    %p84 = scmp.eq.s32.totalorder %s20, 1
    %p85 = por %p83, %p84
    %p86 = scmp.ne.s32.totalorder %s77, %s78
    %p87 = scmp.eq.s32.totalorder %s20, 0
    %p88 = por %p86, %p87
    %p89 = scmp.ne.s32.totalorder %s77, %s78
    %p90 = scmp.eq.s32.totalorder %s21, 1
    %p91 = por %p89, %p90
    %p93 = scmp.ne.s32.totalorder %s78, %s92
    %p94 = scmp.eq.s32.totalorder %s21, 0
    %p95 = por %p93, %p94
    %s97 = sadd.s32 %s96, 1
    %p100 = scmp.eq.s32.totalorder %s15, 1
    %p101 = scmp.ne.s32.totalorder %s96, %s98
    %p102 = scmp.eq.s32.totalorder %s15, 0
    %p103 = por %p101, %p102
    %p104 = scmp.ne.s32.totalorder %s96, %s98
    %p105 = scmp.eq.s32.totalorder %s20, 1
    %p106 = por %p104, %p105
    %p107 = scmp.ne.s32.totalorder %s98, %s99
    %p108 = scmp.eq.s32.totalorder %s20, 0
    %p109 = por %p107, %p108
    %p110 = scmp.ne.s32.totalorder %s98, %s99
    %p111 = scmp.eq.s32.totalorder %s21, 1
    %p112 = por %p110, %p111
    %p114 = scmp.ne.s32.totalorder %s99, %s113
    %p115 = scmp.eq.s32.totalorder %s21, 0
    %p116 = por %p114, %p115
    %s118 = sadd.s32 %s117, 1
    %p121 = scmp.eq.s32.totalorder %s15, 1
    %p122 = scmp.ne.s32.totalorder %s117, %s119
    %p123 = scmp.eq.s32.totalorder %s15, 0
    %p124 = por %p122, %p123
    %p125 = scmp.ne.s32.totalorder %s117, %s119
    %p126 = scmp.eq.s32.totalorder %s20, 1
    %p127 = por %p125, %p126
    %p128 = scmp.ne.s32.totalorder %s119, %s120
    %p129 = scmp.eq.s32.totalorder %s20, 0
    %p130 = por %p128, %p129
    %p131 = scmp.ne.s32.totalorder %s119, %s120
    %p132 = scmp.eq.s32.totalorder %s21, 1
    %p133 = por %p131, %p132
    %p135 = scmp.ne.s32.totalorder %s120, %s134
    %p136 = scmp.eq.s32.totalorder %s21, 0
    %p137 = por %p135, %p136
    %s139 = sadd.s32 %s138, 1
    %p142 = scmp.eq.s32.totalorder %s15, 1
    %p143 = scmp.ne.s32.totalorder %s138, %s140
    %p144 = scmp.eq.s32.totalorder %s15, 0
    %p145 = por %p143, %p144
    %p146 = scmp.ne.s32.totalorder %s138, %s140
    %p147 = scmp.eq.s32.totalorder %s20, 1
    %p148 = por %p146, %p147
    %p149 = scmp.ne.s32.totalorder %s140, %s141
    %p150 = scmp.eq.s32.totalorder %s20, 0
    %p151 = por %p149, %p150
    %p152 = scmp.ne.s32.totalorder %s140, %s141
    %p153 = scmp.eq.s32.totalorder %s21, 1
    %p154 = por %p152, %p153
    %p156 = scmp.ne.s32.totalorder %s141, %s155
    %p157 = scmp.eq.s32.totalorder %s21, 0
    %p158 = por %p156, %p157
    %s160 = sadd.s32 %s159, 1
    %p163 = scmp.eq.s32.totalorder %s15, 1
    %p164 = scmp.ne.s32.totalorder %s159, %s161
    %p165 = scmp.eq.s32.totalorder %s15, 0
    %p166 = por %p164, %p165
    %p167 = scmp.ne.s32.totalorder %s159, %s161
    %p168 = scmp.eq.s32.totalorder %s20, 1
    %p169 = por %p167, %p168
    %p170 = scmp.ne.s32.totalorder %s161, %s162
    %p171 = scmp.eq.s32.totalorder %s20, 0
    %p172 = por %p170, %p171
    %p173 = scmp.ne.s32.totalorder %s161, %s162
    %p174 = scmp.eq.s32.totalorder %s21, 1
    %p175 = por %p173, %p174
    %p177 = scmp.ne.s32.totalorder %s162, %s176
    %p178 = scmp.eq.s32.totalorder %s21, 0
    %p179 = por %p177, %p178
    %s181 = sadd.s32 %s180, 1
    %p184 = scmp.eq.s32.totalorder %s15, 1
    %p185 = scmp.ne.s32.totalorder %s180, %s182
    %p186 = scmp.eq.s32.totalorder %s15, 0
    %p187 = por %p185, %p186
    %p188 = scmp.ne.s32.totalorder %s180, %s182
    %p189 = scmp.eq.s32.totalorder %s20, 1
    %p190 = por %p188, %p189
    %p191 = scmp.ne.s32.totalorder %s182, %s183
    %p192 = scmp.eq.s32.totalorder %s20, 0
    %p193 = por %p191, %p192
    %p194 = scmp.ne.s32.totalorder %s182, %s183
    %p195 = scmp.eq.s32.totalorder %s21, 1
    %p196 = por %p194, %p195
    %p198 = scmp.ne.s32.totalorder %s183, %s197
    %p199 = scmp.eq.s32.totalorder %s21, 0
    %p200 = por %p198, %p199
    %s202 = sadd.s32 %s201, 1
    %p205 = scmp.eq.s32.totalorder %s15, 1
    %p206 = scmp.ne.s32.totalorder %s201, %s203
    %p207 = scmp.eq.s32.totalorder %s15, 0
    %p208 = por %p206, %p207
    %p209 = scmp.ne.s32.totalorder %s201, %s203
    %p210 = scmp.eq.s32.totalorder %s20, 1
    %p211 = por %p209, %p210
    %p212 = scmp.ne.s32.totalorder %s203, %s204
    %p213 = scmp.eq.s32.totalorder %s20, 0
    %p214 = por %p212, %p213
    %p215 = scmp.ne.s32.totalorder %s203, %s204
    %p216 = scmp.eq.s32.totalorder %s21, 1
    %p217 = por %p215, %p216
    %p219 = scmp.ne.s32.totalorder %s204, %s218
    %p220 = scmp.eq.s32.totalorder %s21, 0
    %p221 = por %p219, %p220
    %s222 = ssub.s32 %s15, %s22
    %p223 = scmp.eq.s32.totalorder %s222, 0
    %s225 = sadd.s32 %s224, 1
    %s226 = scalar_select %p223, %s224, %s225
    %p229 = pneg %p223
    %p230 = scmp.eq.s32.totalorder %s15, 1
    %p231 = por %p229, %p230
    %p232 = scmp.ne.s32.totalorder %s224, %s227
    %p233 = scmp.eq.s32.totalorder %s15, 0
    %p234 = por %p232, %p233
    %p235 = scmp.ne.s32.totalorder %s224, %s227
    %p236 = scmp.eq.s32.totalorder %s20, 1
    %p237 = por %p235, %p236
    %p238 = scmp.ne.s32.totalorder %s227, %s228
    %p239 = scmp.eq.s32.totalorder %s20, 0
    %p240 = por %p238, %p239
    %p241 = scmp.ne.s32.totalorder %s227, %s228
    %p242 = scmp.eq.s32.totalorder %s21, 1
    %p243 = por %p241, %p242
    %p245 = scmp.ne.s32.totalorder %s228, %s244
    %p246 = scmp.eq.s32.totalorder %s21, 0
    %p247 = por %p245, %p246
    %p248 = scmp.le.s32.totalorder 1, %s15
    %p249 = scmp.lt.s32.totalorder %s15, 3
    %p250 = pnand %p248, %p249
    %p251 = pneg %p250
    // Predicated region
    $region9: #{up_block_forward.1} parent=5 // pred_check
      _
    $region10: #{up_block_forward.1} parent=5 // pred_check_branch
      %253 = sbr.rel (%p250) target = $region12
    $region11: #{up_block_forward.1} parent=5 // pred_region
      %s254 = ssub.s32 %s15, 1
      // Predicated region
      $region13: #{up_block_forward.1} parent=11 // pred_check
        %p255 = pneg %p88
      $region14: #{up_block_forward.1} parent=11 // pred_check_branch
        %257 = sbr.rel (%p255) target = $region16
      $region15: #{up_block_forward.1} parent=11 // pred_region
        _
      $region16: #{up_block_forward.1} parent=11 // pred_fallthru
        _
      // Predicated region
      $region17: #{up_block_forward.1} parent=11 // pred_check
        %p258 = pneg %p109
      $region18: #{up_block_forward.1} parent=11 // pred_check_branch
        %260 = sbr.rel (%p258) target = $region20
      $region19: #{up_block_forward.1} parent=11 // pred_region
        _
      $region20: #{up_block_forward.1} parent=11 // pred_fallthru
        _
      // Predicated region
      $region21: #{up_block_forward.1} parent=11 // pred_check
        %p261 = pneg %p130
      $region22: #{up_block_forward.1} parent=11 // pred_check_branch
        %263 = sbr.rel (%p261) target = $region24
      $region23: #{up_block_forward.1} parent=11 // pred_region
        _
      $region24: #{up_block_forward.1} parent=11 // pred_fallthru
        _
      // Predicated region
      $region25: #{up_block_forward.1} parent=11 // pred_check
        %p264 = pneg %p151
      $region26: #{up_block_forward.1} parent=11 // pred_check_branch
        %266 = sbr.rel (%p264) target = $region28
      $region27: #{up_block_forward.1} parent=11 // pred_region
        _
      $region28: #{up_block_forward.1} parent=11 // pred_fallthru
        _
      // Predicated region
      $region29: #{up_block_forward.1} parent=11 // pred_check
        %p267 = pneg %p172
      $region30: #{up_block_forward.1} parent=11 // pred_check_branch
        %269 = sbr.rel (%p267) target = $region32
      $region31: #{up_block_forward.1} parent=11 // pred_region
        _
      $region32: #{up_block_forward.1} parent=11 // pred_fallthru
        _
      // Predicated region
      $region33: #{up_block_forward.1} parent=11 // pred_check
        %p270 = pneg %p193
      $region34: #{up_block_forward.1} parent=11 // pred_check_branch
        %272 = sbr.rel (%p270) target = $region36
      $region35: #{up_block_forward.1} parent=11 // pred_region
        _
      $region36: #{up_block_forward.1} parent=11 // pred_fallthru
        _
      // Predicated region
      $region37: #{up_block_forward.1} parent=11 // pred_check
        %p273 = pneg %p214
      $region38: #{up_block_forward.1} parent=11 // pred_check_branch
        %275 = sbr.rel (%p273) target = $region40
      $region39: #{up_block_forward.1} parent=11 // pred_region
        _
      $region40: #{up_block_forward.1} parent=11 // pred_fallthru
        _
    $region12: #{up_block_forward.1} parent=5 // pred_fallthru
      _
    %p276 = scmp.lt.s32.totalorder %s15, 2
    // Predicated region
    $region41: #{up_block_forward.1} parent=5 // pred_check
      %p277 = pneg %p276
    $region42: #{up_block_forward.1} parent=5 // pred_check_branch
      %279 = sbr.rel (%p277) target = $region44
    $region43: #{up_block_forward.1} parent=5 // pred_region
      // Predicated region
      $region45: #{up_block_forward.1} parent=43 // pred_check
        %p280 = pneg %p35
      $region46: #{up_block_forward.1} parent=43 // pred_check_branch
        %282 = sbr.rel (%p280) target = $region48
      $region47: #{up_block_forward.1} parent=43 // pred_region
        %p283 = scmp.lt.s32.totalorder %s15, 1
        %s284 = scalar_select %p283, %s15, 1
        %s285 = smul.addr %s284, 4
        %s286 = smul.addr %s285, 4
        %s287 = scalar_lea.vmem %s0, %s286
      $region48: #{up_block_forward.1} parent=43 // pred_fallthru
        _
      // Predicated region
      $region49: #{up_block_forward.1} parent=43 // pred_check
        %p288 = pneg %p61
      $region50: #{up_block_forward.1} parent=43 // pred_check_branch
        %290 = sbr.rel (%p288) target = $region52
      $region51: #{up_block_forward.1} parent=43 // pred_region
        %p291 = scmp.lt.s32.totalorder %s15, 1
        %s292 = scalar_select %p291, %s15, 1
        %s293 = smul.addr %s292, 2
        %s294 = smul.addr %s293, 8
        %s295 = scalar_lea.vmem %s1, %s294
      $region52: #{up_block_forward.1} parent=43 // pred_fallthru
        _
    $region44: #{up_block_forward.1} parent=5 // pred_fallthru
      _
    %p296 = scmp.le.s32.totalorder 1, %s15
    %p297 = scmp.lt.s32.totalorder %s15, 3
    %p298 = pnand %p296, %p297
    %p299 = pneg %p298
    // Predicated region
    $region53: #{up_block_forward.1} parent=5 // pred_check
      _
    $region54: #{up_block_forward.1} parent=5 // pred_check_branch
      %301 = sbr.rel (%p298) target = $region56
    $region55: #{up_block_forward.1} parent=5 // pred_region
      %s302 = ssub.s32 %s15, 1
      %p303 = scmp.lt.s32.totalorder %s20, 1
      %s304 = scalar_select %p303, %s20, 1
      %s305 = smul.addr %s304, 4
      %s306 = smul.addr %s305, 4
      %s307 = scalar_lea.vmem %s0, %s306
      %p308 = pneg %p41
      %p309 = pneg %p38
      %p310 = scmp.lt.s32.totalorder %s20, 1
      %s311 = scalar_select %p310, %s20, 1
      %s312 = smul.addr %s311, 2
      %s313 = smul.addr %s312, 8
      %s314 = scalar_lea.vmem %s1, %s313
      %p315 = pneg %p67
      %p316 = pneg %p64
      %p317 = pneg %p88
      %p318 = pneg %p85
      %p319 = pneg %p109
      %p320 = pneg %p106
      %p321 = pneg %p130
      %p322 = pneg %p127
      %p323 = pneg %p151
      %p324 = pneg %p148
      %p325 = pneg %p172
      %p326 = pneg %p169
      %p327 = pneg %p193
      %p328 = pneg %p190
      %p329 = pneg %p214
      %p330 = pneg %p211
      %p331 = pneg %p240
      %p332 = pneg %p237
      %p333 = scmp.lt.s32.totalorder %s20, 1
      %s334 = scalar_select %p333, %s20, 1
      %s335 = smul.addr %s334, 3
      %s336 = smul.addr %s335, 4
      %s337 = scalar_lea.vmem %s9, %s336
      %p338 = scmp.lt.s32.totalorder %s20, 1
      %s339 = scalar_select %p338, %s20, 1
      %s340 = smul.addr %s339, 4
      %s341 = smul.addr %s340, 4
      %s342 = scalar_lea.vmem %s0, %s341
      %p343 = scmp.lt.s32.totalorder %s20, 1
      %s344 = scalar_select %p343, %s20, 1
      %s345 = smul.addr %s344, 2
      %s346 = smul.addr %s345, 8
      %s347 = scalar_lea.vmem %s1, %s346
      %p348 = scmp.lt.s32.totalorder %s20, 1
      %s349 = scalar_select %p348, %s20, 1
      %s350 = smul.addr %s349, 3
      %s351 = smul.addr %s350, 4
      %s352 = scalar_lea.vmem %s9, %s351
      %v353 = vld [vmem:[%s347] sm:$0xff]
      %v354 = vld [vmem:[%s347 + $0x8] sm:$0x1]
      %v355 = vld [vmem:[%s3] sm:$0xf]
      %vm356 = vcmask 72704
      %v358 = vsel %vm356, %v355, 0
      %vm360 = vcmask 1040384
      %v362 = vsel %vm360, %v354, 0
      %364 = vmatprep.subr.mxu0 0.0
      %365 = vmatpush1.msra.mxu0 %v353
      %366 = vmatprep.subr.mxu0 0.0
      %367 = vmatpush1.msra.mxu0 %v362
      %368 = vmatprep.subr.mxu0 0.0
      %369 = vmatpush1.msra.mxu0 0.0
      %370 = vmatprep.subr.mxu0 0.0
      %371 = vmatpush1.msra.mxu0 0.0
      %372 = vmatprep.subr.mxu0 0.0
      %373 = vmatpush1.msra.mxu0 0.0
      %374 = vmatprep.subr.mxu0 0.0
      %375 = vmatpush1.msra.mxu0 0.0
      %376 = vmatprep.subr.mxu0 0.0
      %377 = vmatpush1.msra.mxu0 0.0
      %378 = vmatprep.subr.mxu0 0.0
      %379 = vmatpush1.msra.mxu0 0.0
      %380 = vmatprep.subr.mxu0 0.0
      %381 = vmatpush1.msra.mxu0 0.0
      %382 = vmatprep.subr.mxu0 0.0
      %383 = vmatpush1.msra.mxu0 0.0
      %384 = vmatprep.subr.mxu0 0.0
      %385 = vmatpush1.msra.mxu0 0.0
      %386 = vmatprep.subr.mxu0 0.0
      %387 = vmatpush1.msra.mxu0 0.0
      %388 = vmatprep.subr.mxu0 0.0
      %389 = vmatpush1.msra.mxu0 0.0
      %390 = vmatprep.subr.mxu0 0.0
      %391 = vmatpush1.msra.mxu0 0.0
      %392 = vmatprep.subr.mxu0 0.0
      %393 = vmatpush1.msra.mxu0 0.0
      %394 = vmatprep.subr.mxu0 0.0
      %395 = vmatpush1.msra.mxu0 0.0
      %396 = vmatprep.subr.mxu0 0.0
      %397 = vmatpush1.msra.mxu0 0.0
      %398 = vmatprep.subr.mxu0 0.0
      %399 = vmatpush1.msra.mxu0 0.0
      %400 = vmatprep.subr.mxu0 0.0
      %401 = vmatpush1.msra.mxu0 0.0
      %402 = vmatprep.subr.mxu0 0.0
      %403 = vmatpush1.msra.mxu0 0.0
      %404 = vmatprep.subr.mxu0 0.0
      %405 = vmatpush1.msra.mxu0 0.0
      %406 = vmatprep.subr.mxu0 0.0
      %407 = vmatpush1.msra.mxu0 0.0
      %408 = vmatprep.subr.mxu0 0.0
      %409 = vmatpush1.msra.mxu0 0.0
      %410 = vmatprep.subr.mxu0 0.0
      %411 = vmatpush1.msra.mxu0 0.0
      %412 = vmatprep.subr.mxu0 0.0
      %413 = vmatpush1.msra.mxu0 0.0
      %414 = vmatprep.subr.mxu0 0.0
      %415 = vmatpush1.msra.mxu0 0.0
      %416 = vmatprep.subr.mxu0 0.0
      %417 = vmatpush1.msra.mxu0 0.0
      %418 = vmatprep.subr.mxu0 0.0
      %419 = vmatpush1.msra.mxu0 0.0
      %420 = vmatprep.subr.mxu0 0.0
      %421 = vmatpush1.msra.mxu0 0.0
      %422 = vmatprep.subr.mxu0 0.0
      %423 = vmatpush1.msra.mxu0 0.0
      %424 = vmatprep.subr.mxu0 0.0
      %425 = vmatpush1.msra.mxu0 0.0
      %426 = vmatprep.subr.mxu0 0.0
      %427 = vmatpush1.msra.mxu0 0.0
      %428 = vmatprep.mubr.f32.mxu0 0.0
      %429 = vmatmul.mubr.f32.gmra.mrb[0].mxu0 %v358
      %v430 = vpop.f32.mrb[0].mxu0
      %v431 = vadd.f32 0.0, %v430
      %v432 = vpop.f32.mrb[0].mxu0
      %433 = vdwg.mxu0
      %v434 = vld [vmem:[%s4] sm:$0xff]
      %v435 = vld [vmem:[%s4 + $0x8] sm:$0xff]
      %v436 = vld [vmem:[%s4 + $0x10] sm:$0xff]
      %v437 = vld [vmem:[%s4 + $0x18] sm:$0xff]
      %v438 = vld [vmem:[%s4 + $0x20] sm:$0xff]
      %v439 = vld [vmem:[%s4 + $0x28] sm:$0xff]
      %v440 = vld [vmem:[%s4 + $0x30] sm:$0xff]
      %v441 = vld [vmem:[%s4 + $0x38] sm:$0xff]
      %v442 = vld [vmem:[%s4 + $0x40] sm:$0xff]
      %v443 = vld [vmem:[%s4 + $0x48] sm:$0xff]
      %v444 = vld [vmem:[%s4 + $0x50] sm:$0xff]
      %v445 = vld [vmem:[%s4 + $0x58] sm:$0xff]
      %v446 = vld [vmem:[%s4 + $0x60] sm:$0xff]
      %v447 = vld [vmem:[%s4 + $0x68] sm:$0xff]
      %v448 = vld [vmem:[%s4 + $0x70] sm:$0xff]
      %v449 = vld [vmem:[%s4 + $0x78] sm:$0xff]
      %v450 = vld [vmem:[%s4 + $0x80] sm:$0xff]
      %v451 = vld [vmem:[%s4 + $0x88] sm:$0xff]
      %v452 = vld [vmem:[%s4 + $0x90] sm:$0xff]
      %v453 = vld [vmem:[%s4 + $0x98] sm:$0xff]
      %v454 = vld [vmem:[%s4 + $0xa0] sm:$0xff]
      %v455 = vld [vmem:[%s4 + $0xa8] sm:$0xff]
      %v456 = vld [vmem:[%s4 + $0xb0] sm:$0xff]
      %v457 = vld [vmem:[%s4 + $0xb8] sm:$0xff]
      %v458 = vld [vmem:[%s4 + $0xc0] sm:$0xff]
      %v459 = vld [vmem:[%s4 + $0xc8] sm:$0xff]
      %v460 = vld [vmem:[%s4 + $0xd0] sm:$0xff]
      %v461 = vld [vmem:[%s4 + $0xd8] sm:$0xff]
      %v462 = vld [vmem:[%s4 + $0xe0] sm:$0xff]
      %v463 = vld [vmem:[%s4 + $0xe8] sm:$0xff]
      %v464 = vld [vmem:[%s4 + $0xf0] sm:$0xff]
      %v465 = vld [vmem:[%s4 + $0xf8] sm:$0xff]
      %s466 = scalar_lea.vmem %s3, 4
      %v467 = vld [vmem:[%s466] sm:$0xf]
      %v469 = vsel %vm356, %v467, 0
      %471 = vmatprep.subr.mxu0 0.0
      %472 = vmatpush1.msra.mxu0 %v353
      %473 = vmatprep.subr.mxu0 0.0
      %474 = vmatpush1.msra.mxu0 %v362
      %475 = vmatprep.subr.mxu0 0.0
      %476 = vmatpush1.msra.mxu0 0.0
      %477 = vmatprep.subr.mxu0 0.0
      %478 = vmatpush1.msra.mxu0 0.0
      %479 = vmatprep.subr.mxu0 0.0
      %480 = vmatpush1.msra.mxu0 0.0
      %481 = vmatprep.subr.mxu0 0.0
      %482 = vmatpush1.msra.mxu0 0.0
      %483 = vmatprep.subr.mxu0 0.0
      %484 = vmatpush1.msra.mxu0 0.0
      %485 = vmatprep.subr.mxu0 0.0
      %486 = vmatpush1.msra.mxu0 0.0
      %487 = vmatprep.subr.mxu0 0.0
      %488 = vmatpush1.msra.mxu0 0.0
      %489 = vmatprep.subr.mxu0 0.0
      %490 = vmatpush1.msra.mxu0 0.0
      %491 = vmatprep.subr.mxu0 0.0
      %492 = vmatpush1.msra.mxu0 0.0
      %493 = vmatprep.subr.mxu0 0.0
      %494 = vmatpush1.msra.mxu0 0.0
      %495 = vmatprep.subr.mxu0 0.0
      %496 = vmatpush1.msra.mxu0 0.0
      %497 = vmatprep.subr.mxu0 0.0
      %498 = vmatpush1.msra.mxu0 0.0
      %499 = vmatprep.subr.mxu0 0.0
      %500 = vmatpush1.msra.mxu0 0.0
      %501 = vmatprep.subr.mxu0 0.0
      %502 = vmatpush1.msra.mxu0 0.0
      %503 = vmatprep.subr.mxu0 0.0
      %504 = vmatpush1.msra.mxu0 0.0
      %505 = vmatprep.subr.mxu0 0.0
      %506 = vmatpush1.msra.mxu0 0.0
      %507 = vmatprep.subr.mxu0 0.0
      %508 = vmatpush1.msra.mxu0 0.0
      %509 = vmatprep.subr.mxu0 0.0
      %510 = vmatpush1.msra.mxu0 0.0
      %511 = vmatprep.subr.mxu0 0.0
      %512 = vmatpush1.msra.mxu0 0.0
      %513 = vmatprep.subr.mxu0 0.0
      %514 = vmatpush1.msra.mxu0 0.0
      %515 = vmatprep.subr.mxu0 0.0
      %516 = vmatpush1.msra.mxu0 0.0
      %517 = vmatprep.subr.mxu0 0.0
      %518 = vmatpush1.msra.mxu0 0.0
      %519 = vmatprep.subr.mxu0 0.0
      %520 = vmatpush1.msra.mxu0 0.0
      %521 = vmatprep.subr.mxu0 0.0
      %522 = vmatpush1.msra.mxu0 0.0
      %523 = vmatprep.subr.mxu0 0.0
      %524 = vmatpush1.msra.mxu0 0.0
      %525 = vmatprep.subr.mxu0 0.0
      %526 = vmatpush1.msra.mxu0 0.0
      %527 = vmatprep.subr.mxu0 0.0
      %528 = vmatpush1.msra.mxu0 0.0
      %529 = vmatprep.subr.mxu0 0.0
      %530 = vmatpush1.msra.mxu0 0.0
      %531 = vmatprep.subr.mxu0 0.0
      %532 = vmatpush1.msra.mxu0 0.0
      %533 = vmatprep.subr.mxu0 0.0
      %534 = vmatpush1.msra.mxu0 0.0
      %535 = vmatprep.mubr.f32.mxu0 0.0
      %536 = vmatmul.mubr.f32.gmra.mrb[0].mxu0 %v469
      %v537 = vpop.f32.mrb[0].mxu0
      %v538 = vadd.f32 0.0, %v537
      %v539 = vpop.f32.mrb[0].mxu0
      %540 = vdwg.mxu0
      %s541 = scalar_lea.vmem %s4, 256
      %v542 = vld [vmem:[%s541] sm:$0xff]
      %v543 = vld [vmem:[%s541 + $0x8] sm:$0xff]
      %v544 = vld [vmem:[%s541 + $0x10] sm:$0xff]
      %v545 = vld [vmem:[%s541 + $0x18] sm:$0xff]
      %v546 = vld [vmem:[%s541 + $0x20] sm:$0xff]
      %v547 = vld [vmem:[%s541 + $0x28] sm:$0xff]
      %v548 = vld [vmem:[%s541 + $0x30] sm:$0xff]
      %v549 = vld [vmem:[%s541 + $0x38] sm:$0xff]
      %v550 = vld [vmem:[%s541 + $0x40] sm:$0xff]
      %v551 = vld [vmem:[%s541 + $0x48] sm:$0xff]
      %v552 = vld [vmem:[%s541 + $0x50] sm:$0xff]
      %v553 = vld [vmem:[%s541 + $0x58] sm:$0xff]
      %v554 = vld [vmem:[%s541 + $0x60] sm:$0xff]
      %v555 = vld [vmem:[%s541 + $0x68] sm:$0xff]
      %v556 = vld [vmem:[%s541 + $0x70] sm:$0xff]
      %v557 = vld [vmem:[%s541 + $0x78] sm:$0xff]
      %v558 = vld [vmem:[%s541 + $0x80] sm:$0xff]
      %v559 = vld [vmem:[%s541 + $0x88] sm:$0xff]
      %v560 = vld [vmem:[%s541 + $0x90] sm:$0xff]
      %v561 = vld [vmem:[%s541 + $0x98] sm:$0xff]
      %v562 = vld [vmem:[%s541 + $0xa0] sm:$0xff]
      %v563 = vld [vmem:[%s541 + $0xa8] sm:$0xff]
      %v564 = vld [vmem:[%s541 + $0xb0] sm:$0xff]
      %v565 = vld [vmem:[%s541 + $0xb8] sm:$0xff]
      %v566 = vld [vmem:[%s541 + $0xc0] sm:$0xff]
      %v567 = vld [vmem:[%s541 + $0xc8] sm:$0xff]
      %v568 = vld [vmem:[%s541 + $0xd0] sm:$0xff]
      %v569 = vld [vmem:[%s541 + $0xd8] sm:$0xff]
      %v570 = vld [vmem:[%s541 + $0xe0] sm:$0xff]
      %v571 = vld [vmem:[%s541 + $0xe8] sm:$0xff]
      %v572 = vld [vmem:[%s541 + $0xf0] sm:$0xff]
      %v573 = vld [vmem:[%s541 + $0xf8] sm:$0xff]
      %vm574 = vcmask 523264
      %v576 = vsel %vm574, %v538, 0
      %578 = vmatprep.subr.mxu0 %v543
      %579 = vmatpush1.msra.mxu0 %v542
      %580 = vmatprep.subr.mxu0 %v547
      %581 = vmatpush1.msra.mxu0 %v546
      %582 = vmatprep.subr.mxu0 %v551
      %583 = vmatpush1.msra.mxu0 %v550
      %584 = vmatprep.subr.mxu0 %v555
      %585 = vmatpush1.msra.mxu0 %v554
      %586 = vmatprep.subr.mxu0 %v559
      %587 = vmatpush1.msra.mxu0 %v558
      %588 = vmatprep.subr.mxu0 %v563
      %589 = vmatpush1.msra.mxu0 %v562
      %590 = vmatprep.subr.mxu0 %v567
      %591 = vmatpush1.msra.mxu0 %v566
      %592 = vmatprep.subr.mxu0 %v571
      %593 = vmatpush1.msra.mxu0 %v570
      %594 = vmatprep.subr.mxu0 0.0
      %595 = vmatpush1.msra.mxu0 0.0
      %596 = vmatprep.subr.mxu0 0.0
      %597 = vmatpush1.msra.mxu0 0.0
      %598 = vmatprep.subr.mxu0 0.0
      %599 = vmatpush1.msra.mxu0 0.0
      %600 = vmatprep.subr.mxu0 0.0
      %601 = vmatpush1.msra.mxu0 0.0
      %602 = vmatprep.subr.mxu0 0.0
      %603 = vmatpush1.msra.mxu0 0.0
      %604 = vmatprep.subr.mxu0 0.0
      %605 = vmatpush1.msra.mxu0 0.0
      %606 = vmatprep.subr.mxu0 0.0
      %607 = vmatpush1.msra.mxu0 0.0
      %608 = vmatprep.subr.mxu0 0.0
      %609 = vmatpush1.msra.mxu0 0.0
      %610 = vmatprep.subr.mxu0 0.0
      %611 = vmatpush1.msra.mxu0 0.0
      %612 = vmatprep.subr.mxu0 0.0
      %613 = vmatpush1.msra.mxu0 0.0
      %614 = vmatprep.subr.mxu0 0.0
      %615 = vmatpush1.msra.mxu0 0.0
      %616 = vmatprep.subr.mxu0 0.0
      %617 = vmatpush1.msra.mxu0 0.0
      %618 = vmatprep.subr.mxu0 0.0
      %619 = vmatpush1.msra.mxu0 0.0
      %620 = vmatprep.subr.mxu0 0.0
      %621 = vmatpush1.msra.mxu0 0.0
      %622 = vmatprep.subr.mxu0 0.0
      %623 = vmatpush1.msra.mxu0 0.0
      %624 = vmatprep.subr.mxu0 0.0
      %625 = vmatpush1.msra.mxu0 0.0
      %626 = vmatprep.subr.mxu0 0.0
      %627 = vmatpush1.msra.mxu0 0.0
      %628 = vmatprep.subr.mxu0 0.0
      %629 = vmatpush1.msra.mxu0 0.0
      %630 = vmatprep.subr.mxu0 0.0
      %631 = vmatpush1.msra.mxu0 0.0
      %632 = vmatprep.subr.mxu0 0.0
      %633 = vmatpush1.msra.mxu0 0.0
      %634 = vmatprep.subr.mxu0 0.0
      %635 = vmatpush1.msra.mxu0 0.0
      %636 = vmatprep.subr.mxu0 0.0
      %637 = vmatpush1.msra.mxu0 0.0
      %638 = vmatprep.subr.mxu0 0.0
      %639 = vmatpush1.msra.mxu0 0.0
      %640 = vmatprep.subr.mxu0 0.0
      %641 = vmatpush1.msra.mxu0 0.0
      %642 = vmatprep.mubr.f32.mxu0 0.0
      %643 = vmatmul.mubr.f32.gmra.mrb[0].mxu0 %v576
      %v644 = vpop.f32.mrb[0].mxu0
      %v645 = vadd.f32 0.0, %v644
      %v646 = vpop.f32.mrb[0].mxu0
      %v647 = vadd.f32 0.0, %v646
      %648 = vdwg.mxu0
      %649 = vmatprep.subr.mxu0 %v545
      %650 = vmatpush1.msra.mxu0 %v544
      %651 = vmatprep.subr.mxu0 %v549
      %652 = vmatpush1.msra.mxu0 %v548
      %653 = vmatprep.subr.mxu0 %v553
      %654 = vmatpush1.msra.mxu0 %v552
      %655 = vmatprep.subr.mxu0 %v557
      %656 = vmatpush1.msra.mxu0 %v556
      %657 = vmatprep.subr.mxu0 %v561
      %658 = vmatpush1.msra.mxu0 %v560
      %659 = vmatprep.subr.mxu0 %v565
      %660 = vmatpush1.msra.mxu0 %v564
      %661 = vmatprep.subr.mxu0 %v569
      %662 = vmatpush1.msra.mxu0 %v568
      %663 = vmatprep.subr.mxu0 %v573
      %664 = vmatpush1.msra.mxu0 %v572
      %665 = vmatprep.subr.mxu0 0.0
      %666 = vmatpush1.msra.mxu0 0.0
      %667 = vmatprep.subr.mxu0 0.0
      %668 = vmatpush1.msra.mxu0 0.0
      %669 = vmatprep.subr.mxu0 0.0
      %670 = vmatpush1.msra.mxu0 0.0
      %671 = vmatprep.subr.mxu0 0.0
      %672 = vmatpush1.msra.mxu0 0.0
      %673 = vmatprep.subr.mxu0 0.0
      %674 = vmatpush1.msra.mxu0 0.0
      %675 = vmatprep.subr.mxu0 0.0
      %676 = vmatpush1.msra.mxu0 0.0
      %677 = vmatprep.subr.mxu0 0.0
      %678 = vmatpush1.msra.mxu0 0.0
      %679 = vmatprep.subr.mxu0 0.0
      %680 = vmatpush1.msra.mxu0 0.0
      %681 = vmatprep.subr.mxu0 0.0
      %682 = vmatpush1.msra.mxu0 0.0
      %683 = vmatprep.subr.mxu0 0.0
      %684 = vmatpush1.msra.mxu0 0.0
      %685 = vmatprep.subr.mxu0 0.0
      %686 = vmatpush1.msra.mxu0 0.0
      %687 = vmatprep.subr.mxu0 0.0
      %688 = vmatpush1.msra.mxu0 0.0
      %689 = vmatprep.subr.mxu0 0.0
      %690 = vmatpush1.msra.mxu0 0.0
      %691 = vmatprep.subr.mxu0 0.0
      %692 = vmatpush1.msra.mxu0 0.0
      %693 = vmatprep.subr.mxu0 0.0
      %694 = vmatpush1.msra.mxu0 0.0
      %695 = vmatprep.subr.mxu0 0.0
      %696 = vmatpush1.msra.mxu0 0.0
      %697 = vmatprep.subr.mxu0 0.0
      %698 = vmatpush1.msra.mxu0 0.0
      %699 = vmatprep.subr.mxu0 0.0
      %700 = vmatpush1.msra.mxu0 0.0
      %701 = vmatprep.subr.mxu0 0.0
      %702 = vmatpush1.msra.mxu0 0.0
      %703 = vmatprep.subr.mxu0 0.0
      %704 = vmatpush1.msra.mxu0 0.0
      %705 = vmatprep.subr.mxu0 0.0
      %706 = vmatpush1.msra.mxu0 0.0
      %707 = vmatprep.subr.mxu0 0.0
      %708 = vmatpush1.msra.mxu0 0.0
      %709 = vmatprep.subr.mxu0 0.0
      %710 = vmatpush1.msra.mxu0 0.0
      %711 = vmatprep.subr.mxu0 0.0
      %712 = vmatpush1.msra.mxu0 0.0
      %713 = vmatprep.mubr.f32.mxu0 0.0
      %714 = vmatmul.mubr.f32.gmra.mrb[0].mxu0 %v576
      %v715 = vpop.f32.mrb[0].mxu0
      %v716 = vadd.f32 0.0, %v715
      %v717 = vpop.f32.mrb[0].mxu0
      %v718 = vadd.f32 0.0, %v717
      %719 = vdwg.mxu0
      %v721 = vsel %vm574, %v431, 0
      %723 = vmatprep.subr.mxu0 %v435
      %724 = vmatpush1.msra.mxu0 %v434
      %725 = vmatprep.subr.mxu0 %v439
      %726 = vmatpush1.msra.mxu0 %v438
      %727 = vmatprep.subr.mxu0 %v443
      %728 = vmatpush1.msra.mxu0 %v442
      %729 = vmatprep.subr.mxu0 %v447
      %730 = vmatpush1.msra.mxu0 %v446
      %731 = vmatprep.subr.mxu0 %v451
      %732 = vmatpush1.msra.mxu0 %v450
      %733 = vmatprep.subr.mxu0 %v455
      %734 = vmatpush1.msra.mxu0 %v454
      %735 = vmatprep.subr.mxu0 %v459
      %736 = vmatpush1.msra.mxu0 %v458
      %737 = vmatprep.subr.mxu0 %v463
      %738 = vmatpush1.msra.mxu0 %v462
      %739 = vmatprep.subr.mxu0 0.0
      %740 = vmatpush1.msra.mxu0 0.0
      %741 = vmatprep.subr.mxu0 0.0
      %742 = vmatpush1.msra.mxu0 0.0
      %743 = vmatprep.subr.mxu0 0.0
      %744 = vmatpush1.msra.mxu0 0.0
      %745 = vmatprep.subr.mxu0 0.0
      %746 = vmatpush1.msra.mxu0 0.0
      %747 = vmatprep.subr.mxu0 0.0
      %748 = vmatpush1.msra.mxu0 0.0
      %749 = vmatprep.subr.mxu0 0.0
      %750 = vmatpush1.msra.mxu0 0.0
      %751 = vmatprep.subr.mxu0 0.0
      %752 = vmatpush1.msra.mxu0 0.0
      %753 = vmatprep.subr.mxu0 0.0
      %754 = vmatpush1.msra.mxu0 0.0
      %755 = vmatprep.subr.mxu0 0.0
      %756 = vmatpush1.msra.mxu0 0.0
      %757 = vmatprep.subr.mxu0 0.0
      %758 = vmatpush1.msra.mxu0 0.0
      %759 = vmatprep.subr.mxu0 0.0
      %760 = vmatpush1.msra.mxu0 0.0
      %761 = vmatprep.subr.mxu0 0.0
      %762 = vmatpush1.msra.mxu0 0.0
      %763 = vmatprep.subr.mxu0 0.0
      %764 = vmatpush1.msra.mxu0 0.0
      %765 = vmatprep.subr.mxu0 0.0
      %766 = vmatpush1.msra.mxu0 0.0
      %767 = vmatprep.subr.mxu0 0.0
      %768 = vmatpush1.msra.mxu0 0.0
      %769 = vmatprep.subr.mxu0 0.0
      %770 = vmatpush1.msra.mxu0 0.0
      %771 = vmatprep.subr.mxu0 0.0
      %772 = vmatpush1.msra.mxu0 0.0
      %773 = vmatprep.subr.mxu0 0.0
      %774 = vmatpush1.msra.mxu0 0.0
      %775 = vmatprep.subr.mxu0 0.0
      %776 = vmatpush1.msra.mxu0 0.0
      %777 = vmatprep.subr.mxu0 0.0
      %778 = vmatpush1.msra.mxu0 0.0
      %779 = vmatprep.subr.mxu0 0.0
      %780 = vmatpush1.msra.mxu0 0.0
      %781 = vmatprep.subr.mxu0 0.0
      %782 = vmatpush1.msra.mxu0 0.0
      %783 = vmatprep.subr.mxu0 0.0
      %784 = vmatpush1.msra.mxu0 0.0
      %785 = vmatprep.subr.mxu0 0.0
      %786 = vmatpush1.msra.mxu0 0.0
      %787 = vmatprep.mubr.f32.mxu0 0.0
      %788 = vmatmul.mubr.f32.gmra.mrb[0].mxu0 %v721
      %v789 = vpop.f32.mrb[0].mxu0
      %v790 = vadd.f32 %v645, %v789
      %v791 = vpop.f32.mrb[0].mxu0
      %v792 = vadd.f32 %v647, %v791
      %793 = vdwg.mxu0
      %794 = vmatprep.subr.mxu0 %v437
      %795 = vmatpush1.msra.mxu0 %v436
      %796 = vmatprep.subr.mxu0 %v441
      %797 = vmatpush1.msra.mxu0 %v440
      %798 = vmatprep.subr.mxu0 %v445
      %799 = vmatpush1.msra.mxu0 %v444
      %800 = vmatprep.subr.mxu0 %v449
      %801 = vmatpush1.msra.mxu0 %v448
      %802 = vmatprep.subr.mxu0 %v453
      %803 = vmatpush1.msra.mxu0 %v452
      %804 = vmatprep.subr.mxu0 %v457
      %805 = vmatpush1.msra.mxu0 %v456
      %806 = vmatprep.subr.mxu0 %v461
      %807 = vmatpush1.msra.mxu0 %v460
      %808 = vmatprep.subr.mxu0 %v465
      %809 = vmatpush1.msra.mxu0 %v464
      %810 = vmatprep.subr.mxu0 0.0
      %811 = vmatpush1.msra.mxu0 0.0
      %812 = vmatprep.subr.mxu0 0.0
      %813 = vmatpush1.msra.mxu0 0.0
      %814 = vmatprep.subr.mxu0 0.0
      %815 = vmatpush1.msra.mxu0 0.0
      %816 = vmatprep.subr.mxu0 0.0
      %817 = vmatpush1.msra.mxu0 0.0
      %818 = vmatprep.subr.mxu0 0.0
      %819 = vmatpush1.msra.mxu0 0.0
      %820 = vmatprep.subr.mxu0 0.0
      %821 = vmatpush1.msra.mxu0 0.0
      %822 = vmatprep.subr.mxu0 0.0
      %823 = vmatpush1.msra.mxu0 0.0
      %824 = vmatprep.subr.mxu0 0.0
      %825 = vmatpush1.msra.mxu0 0.0
      %826 = vmatprep.subr.mxu0 0.0
      %827 = vmatpush1.msra.mxu0 0.0
      %828 = vmatprep.subr.mxu0 0.0
      %829 = vmatpush1.msra.mxu0 0.0
      %830 = vmatprep.subr.mxu0 0.0
      %831 = vmatpush1.msra.mxu0 0.0
      %832 = vmatprep.subr.mxu0 0.0
      %833 = vmatpush1.msra.mxu0 0.0
      %834 = vmatprep.subr.mxu0 0.0
      %835 = vmatpush1.msra.mxu0 0.0
      %836 = vmatprep.subr.mxu0 0.0
      %837 = vmatpush1.msra.mxu0 0.0
      %838 = vmatprep.subr.mxu0 0.0
      %839 = vmatpush1.msra.mxu0 0.0
      %840 = vmatprep.subr.mxu0 0.0
      %841 = vmatpush1.msra.mxu0 0.0
      %842 = vmatprep.subr.mxu0 0.0
      %843 = vmatpush1.msra.mxu0 0.0
      %844 = vmatprep.subr.mxu0 0.0
      %845 = vmatpush1.msra.mxu0 0.0
      %846 = vmatprep.subr.mxu0 0.0
      %847 = vmatpush1.msra.mxu0 0.0
      %848 = vmatprep.subr.mxu0 0.0
      %849 = vmatpush1.msra.mxu0 0.0
      %850 = vmatprep.subr.mxu0 0.0
      %851 = vmatpush1.msra.mxu0 0.0
      %852 = vmatprep.subr.mxu0 0.0
      %853 = vmatpush1.msra.mxu0 0.0
      %854 = vmatprep.subr.mxu0 0.0
      %855 = vmatpush1.msra.mxu0 0.0
      %856 = vmatprep.subr.mxu0 0.0
      %857 = vmatpush1.msra.mxu0 0.0
      %858 = vmatprep.mubr.f32.mxu0 0.0
      %859 = vmatmul.mubr.f32.gmra.mrb[0].mxu0 %v721
      %v860 = vpop.f32.mrb[0].mxu0
      %v861 = vadd.f32 %v716, %v860
      %v862 = vpop.f32.mrb[0].mxu0
      %v863 = vadd.f32 %v718, %v862
      %864 = vdwg.mxu0
      %s865 = scalar_lea.vmem %s3, 8
      %v866 = vld [vmem:[%s865] sm:$0xf]
      %v868 = vsel %vm356, %v866, 0
      %870 = vmatprep.subr.mxu0 0.0
      %871 = vmatpush1.msra.mxu0 %v353
      %872 = vmatprep.subr.mxu0 0.0
      %873 = vmatpush1.msra.mxu0 %v362
      %874 = vmatprep.subr.mxu0 0.0
      %875 = vmatpush1.msra.mxu0 0.0
      %876 = vmatprep.subr.mxu0 0.0
      %877 = vmatpush1.msra.mxu0 0.0
      %878 = vmatprep.subr.mxu0 0.0
      %879 = vmatpush1.msra.mxu0 0.0
      %880 = vmatprep.subr.mxu0 0.0
      %881 = vmatpush1.msra.mxu0 0.0
      %882 = vmatprep.subr.mxu0 0.0
      %883 = vmatpush1.msra.mxu0 0.0
      %884 = vmatprep.subr.mxu0 0.0
      %885 = vmatpush1.msra.mxu0 0.0
      %886 = vmatprep.subr.mxu0 0.0
      %887 = vmatpush1.msra.mxu0 0.0
      %888 = vmatprep.subr.mxu0 0.0
      %889 = vmatpush1.msra.mxu0 0.0
      %890 = vmatprep.subr.mxu0 0.0
      %891 = vmatpush1.msra.mxu0 0.0
      %892 = vmatprep.subr.mxu0 0.0
      %893 = vmatpush1.msra.mxu0 0.0
      %894 = vmatprep.subr.mxu0 0.0
      %895 = vmatpush1.msra.mxu0 0.0
      %896 = vmatprep.subr.mxu0 0.0
      %897 = vmatpush1.msra.mxu0 0.0
      %898 = vmatprep.subr.mxu0 0.0
      %899 = vmatpush1.msra.mxu0 0.0
      %900 = vmatprep.subr.mxu0 0.0
      %901 = vmatpush1.msra.mxu0 0.0
      %902 = vmatprep.subr.mxu0 0.0
      %903 = vmatpush1.msra.mxu0 0.0
      %904 = vmatprep.subr.mxu0 0.0
      %905 = vmatpush1.msra.mxu0 0.0
      %906 = vmatprep.subr.mxu0 0.0
      %907 = vmatpush1.msra.mxu0 0.0
      %908 = vmatprep.subr.mxu0 0.0
      %909 = vmatpush1.msra.mxu0 0.0
      %910 = vmatprep.subr.mxu0 0.0
      %911 = vmatpush1.msra.mxu0 0.0
      %912 = vmatprep.subr.mxu0 0.0
      %913 = vmatpush1.msra.mxu0 0.0
      %914 = vmatprep.subr.mxu0 0.0
      %915 = vmatpush1.msra.mxu0 0.0
      %916 = vmatprep.subr.mxu0 0.0
      %917 = vmatpush1.msra.mxu0 0.0
      %918 = vmatprep.subr.mxu0 0.0
      %919 = vmatpush1.msra.mxu0 0.0
      %920 = vmatprep.subr.mxu0 0.0
      %921 = vmatpush1.msra.mxu0 0.0
      %922 = vmatprep.subr.mxu0 0.0
      %923 = vmatpush1.msra.mxu0 0.0
      %924 = vmatprep.subr.mxu0 0.0
      %925 = vmatpush1.msra.mxu0 0.0
      %926 = vmatprep.subr.mxu0 0.0
      %927 = vmatpush1.msra.mxu0 0.0
      %928 = vmatprep.subr.mxu0 0.0
      %929 = vmatpush1.msra.mxu0 0.0
      %930 = vmatprep.subr.mxu0 0.0
      %931 = vmatpush1.msra.mxu0 0.0
      %932 = vmatprep.subr.mxu0 0.0
      %933 = vmatpush1.msra.mxu0 0.0
      %934 = vmatprep.mubr.f32.mxu0 0.0
      %935 = vmatmul.mubr.f32.gmra.mrb[0].mxu0 %v868
      %v936 = vpop.f32.mrb[0].mxu0
      %v937 = vadd.f32 0.0, %v936
      %v938 = vpop.f32.mrb[0].mxu0
      %939 = vdwg.mxu0
      %s940 = scalar_lea.vmem %s4, 512
      %v941 = vld [vmem:[%s940] sm:$0xff]
      %v942 = vld [vmem:[%s940 + $0x8] sm:$0xff]
      %v943 = vld [vmem:[%s940 + $0x10] sm:$0xff]
      %v944 = vld [vmem:[%s940 + $0x18] sm:$0xff]
      %v945 = vld [vmem:[%s940 + $0x20] sm:$0xff]
      %v946 = vld [vmem:[%s940 + $0x28] sm:$0xff]
      %v947 = vld [vmem:[%s940 + $0x30] sm:$0xff]
      %v948 = vld [vmem:[%s940 + $0x38] sm:$0xff]
      %v949 = vld [vmem:[%s940 + $0x40] sm:$0xff]
      %v950 = vld [vmem:[%s940 + $0x48] sm:$0xff]
      %v951 = vld [vmem:[%s940 + $0x50] sm:$0xff]
      %v952 = vld [vmem:[%s940 + $0x58] sm:$0xff]
      %v953 = vld [vmem:[%s940 + $0x60] sm:$0xff]
      %v954 = vld [vmem:[%s940 + $0x68] sm:$0xff]
      %v955 = vld [vmem:[%s940 + $0x70] sm:$0xff]
      %v956 = vld [vmem:[%s940 + $0x78] sm:$0xff]
      %v957 = vld [vmem:[%s940 + $0x80] sm:$0xff]
      %v958 = vld [vmem:[%s940 + $0x88] sm:$0xff]
      %v959 = vld [vmem:[%s940 + $0x90] sm:$0xff]
      %v960 = vld [vmem:[%s940 + $0x98] sm:$0xff]
      %v961 = vld [vmem:[%s940 + $0xa0] sm:$0xff]
      %v962 = vld [vmem:[%s940 + $0xa8] sm:$0xff]
      %v963 = vld [vmem:[%s940 + $0xb0] sm:$0xff]
      %v964 = vld [vmem:[%s940 + $0xb8] sm:$0xff]
      %v965 = vld [vmem:[%s940 + $0xc0] sm:$0xff]
      %v966 = vld [vmem:[%s940 + $0xc8] sm:$0xff]
      %v967 = vld [vmem:[%s940 + $0xd0] sm:$0xff]
      %v968 = vld [vmem:[%s940 + $0xd8] sm:$0xff]
      %v969 = vld [vmem:[%s940 + $0xe0] sm:$0xff]
      %v970 = vld [vmem:[%s940 + $0xe8] sm:$0xff]
      %v971 = vld [vmem:[%s940 + $0xf0] sm:$0xff]
      %v972 = vld [vmem:[%s940 + $0xf8] sm:$0xff]
      %v974 = vsel %vm574, %v937, 0
      %976 = vmatprep.subr.mxu0 %v942
      %977 = vmatpush1.msra.mxu0 %v941
      %978 = vmatprep.subr.mxu0 %v946
      %979 = vmatpush1.msra.mxu0 %v945
      %980 = vmatprep.subr.mxu0 %v950
      %981 = vmatpush1.msra.mxu0 %v949
      %982 = vmatprep.subr.mxu0 %v954
      %983 = vmatpush1.msra.mxu0 %v953
      %984 = vmatprep.subr.mxu0 %v958
      %985 = vmatpush1.msra.mxu0 %v957
      %986 = vmatprep.subr.mxu0 %v962
      %987 = vmatpush1.msra.mxu0 %v961
      %988 = vmatprep.subr.mxu0 %v966
      %989 = vmatpush1.msra.mxu0 %v965
      %990 = vmatprep.subr.mxu0 %v970
      %991 = vmatpush1.msra.mxu0 %v969
      %992 = vmatprep.subr.mxu0 0.0
      %993 = vmatpush1.msra.mxu0 0.0
      %994 = vmatprep.subr.mxu0 0.0
      %995 = vmatpush1.msra.mxu0 0.0
      %996 = vmatprep.subr.mxu0 0.0
      %997 = vmatpush1.msra.mxu0 0.0
      %998 = vmatprep.subr.mxu0 0.0
      %999 = vmatpush1.msra.mxu0 0.0
      %1000 = vmatprep.subr.mxu0 0.0
      %1001 = vmatpush1.msra.mxu0 0.0
      %1002 = vmatprep.subr.mxu0 0.0
      %1003 = vmatpush1.msra.mxu0 0.0
      %1004 = vmatprep.subr.mxu0 0.0
      %1005 = vmatpush1.msra.mxu0 0.0
      %1006 = vmatprep.subr.mxu0 0.0
      %1007 = vmatpush1.msra.mxu0 0.0
      %1008 = vmatprep.subr.mxu0 0.0
      %1009 = vmatpush1.msra.mxu0 0.0
      %1010 = vmatprep.subr.mxu0 0.0
      %1011 = vmatpush1.msra.mxu0 0.0
      %1012 = vmatprep.subr.mxu0 0.0
      %1013 = vmatpush1.msra.mxu0 0.0
      %1014 = vmatprep.subr.mxu0 0.0
      %1015 = vmatpush1.msra.mxu0 0.0
      %1016 = vmatprep.subr.mxu0 0.0
      %1017 = vmatpush1.msra.mxu0 0.0
      %1018 = vmatprep.subr.mxu0 0.0
      %1019 = vmatpush1.msra.mxu0 0.0
      %1020 = vmatprep.subr.mxu0 0.0
      %1021 = vmatpush1.msra.mxu0 0.0
      %1022 = vmatprep.subr.mxu0 0.0
      %1023 = vmatpush1.msra.mxu0 0.0
      %1024 = vmatprep.subr.mxu0 0.0
      %1025 = vmatpush1.msra.mxu0 0.0
      %1026 = vmatprep.subr.mxu0 0.0
      %1027 = vmatpush1.msra.mxu0 0.0
      %1028 = vmatprep.subr.mxu0 0.0
      %1029 = vmatpush1.msra.mxu0 0.0
      %1030 = vmatprep.subr.mxu0 0.0
      %1031 = vmatpush1.msra.mxu0 0.0
      %1032 = vmatprep.subr.mxu0 0.0
      %1033 = vmatpush1.msra.mxu0 0.0
      %1034 = vmatprep.subr.mxu0 0.0
      %1035 = vmatpush1.msra.mxu0 0.0
      %1036 = vmatprep.subr.mxu0 0.0
      %1037 = vmatpush1.msra.mxu0 0.0
      %1038 = vmatprep.subr.mxu0 0.0
      %1039 = vmatpush1.msra.mxu0 0.0
      %1040 = vmatprep.mubr.f32.mxu0 0.0
      %1041 = vmatmul.mubr.f32.gmra.mrb[0].mxu0 %v974
      %v1042 = vpop.f32.mrb[0].mxu0
      %v1043 = vadd.f32 0.0, %v1042
      %v1044 = vpop.f32.mrb[0].mxu0
      %v1045 = vadd.f32 0.0, %v1044
      %1046 = vdwg.mxu0
      %1047 = vmatprep.subr.mxu0 %v944
      %1048 = vmatpush1.msra.mxu0 %v943
      %1049 = vmatprep.subr.mxu0 %v948
      %1050 = vmatpush1.msra.mxu0 %v947
      %1051 = vmatprep.subr.mxu0 %v952
      %1052 = vmatpush1.msra.mxu0 %v951
      %1053 = vmatprep.subr.mxu0 %v956
      %1054 = vmatpush1.msra.mxu0 %v955
      %1055 = vmatprep.subr.mxu0 %v960
      %1056 = vmatpush1.msra.mxu0 %v959
      %1057 = vmatprep.subr.mxu0 %v964
      %1058 = vmatpush1.msra.mxu0 %v963
      %1059 = vmatprep.subr.mxu0 %v968
      %1060 = vmatpush1.msra.mxu0 %v967
      %1061 = vmatprep.subr.mxu0 %v972
      %1062 = vmatpush1.msra.mxu0 %v971
      %1063 = vmatprep.subr.mxu0 0.0
      %1064 = vmatpush1.msra.mxu0 0.0
      %1065 = vmatprep.subr.mxu0 0.0
      %1066 = vmatpush1.msra.mxu0 0.0
      %1067 = vmatprep.subr.mxu0 0.0
      %1068 = vmatpush1.msra.mxu0 0.0
      %1069 = vmatprep.subr.mxu0 0.0
      %1070 = vmatpush1.msra.mxu0 0.0
      %1071 = vmatprep.subr.mxu0 0.0
      %1072 = vmatpush1.msra.mxu0 0.0
      %1073 = vmatprep.subr.mxu0 0.0
      %1074 = vmatpush1.msra.mxu0 0.0
      %1075 = vmatprep.subr.mxu0 0.0
      %1076 = vmatpush1.msra.mxu0 0.0
      %1077 = vmatprep.subr.mxu0 0.0
      %1078 = vmatpush1.msra.mxu0 0.0
      %1079 = vmatprep.subr.mxu0 0.0
      %1080 = vmatpush1.msra.mxu0 0.0
      %1081 = vmatprep.subr.mxu0 0.0
      %1082 = vmatpush1.msra.mxu0 0.0
      %1083 = vmatprep.subr.mxu0 0.0
      %1084 = vmatpush1.msra.mxu0 0.0
      %1085 = vmatprep.subr.mxu0 0.0
      %1086 = vmatpush1.msra.mxu0 0.0
      %1087 = vmatprep.subr.mxu0 0.0
      %1088 = vmatpush1.msra.mxu0 0.0
      %1089 = vmatprep.subr.mxu0 0.0
      %1090 = vmatpush1.msra.mxu0 0.0
      %1091 = vmatprep.subr.mxu0 0.0
      %1092 = vmatpush1.msra.mxu0 0.0
      %1093 = vmatprep.subr.mxu0 0.0
      %1094 = vmatpush1.msra.mxu0 0.0
      %1095 = vmatprep.subr.mxu0 0.0
      %1096 = vmatpush1.msra.mxu0 0.0
      %1097 = vmatprep.subr.mxu0 0.0
      %1098 = vmatpush1.msra.mxu0 0.0
      %1099 = vmatprep.subr.mxu0 0.0
      %1100 = vmatpush1.msra.mxu0 0.0
      %1101 = vmatprep.subr.mxu0 0.0
      %1102 = vmatpush1.msra.mxu0 0.0
      %1103 = vmatprep.subr.mxu0 0.0
      %1104 = vmatpush1.msra.mxu0 0.0
      %1105 = vmatprep.subr.mxu0 0.0
      %1106 = vmatpush1.msra.mxu0 0.0
      %1107 = vmatprep.subr.mxu0 0.0
      %1108 = vmatpush1.msra.mxu0 0.0
      %1109 = vmatprep.subr.mxu0 0.0
      %1110 = vmatpush1.msra.mxu0 0.0
      %1111 = vmatprep.mubr.f32.mxu0 0.0
      %1112 = vmatmul.mubr.f32.gmra.mrb[0].mxu0 %v974
      %v1113 = vpop.f32.mrb[0].mxu0
      %v1114 = vadd.f32 0.0, %v1113
      %v1115 = vpop.f32.mrb[0].mxu0
      %v1116 = vadd.f32 0.0, %v1115
      %1117 = vdwg.mxu0
      %v1118 = vadd.f32 %v790, %v1043
      %v1119 = vadd.f32 %v792, %v1045
      %v1120 = vadd.f32 %v861, %v1114
      %v1121 = vadd.f32 %v863, %v1116
      %s1122 = scalar_lea.vmem %s3, 12
      %v1123 = vld [vmem:[%s1122] sm:$0xf]
      %v1125 = vsel %vm356, %v1123, 0
      %1127 = vmatprep.subr.mxu0 0.0
      %1128 = vmatpush1.msra.mxu0 %v353
      %1129 = vmatprep.subr.mxu0 0.0
      %1130 = vmatpush1.msra.mxu0 %v362
      %1131 = vmatprep.subr.mxu0 0.0
      %1132 = vmatpush1.msra.mxu0 0.0
      %1133 = vmatprep.subr.mxu0 0.0
      %1134 = vmatpush1.msra.mxu0 0.0
      %1135 = vmatprep.subr.mxu0 0.0
      %1136 = vmatpush1.msra.mxu0 0.0
      %1137 = vmatprep.subr.mxu0 0.0
      %1138 = vmatpush1.msra.mxu0 0.0
      %1139 = vmatprep.subr.mxu0 0.0
      %1140 = vmatpush1.msra.mxu0 0.0
      %1141 = vmatprep.subr.mxu0 0.0
      %1142 = vmatpush1.msra.mxu0 0.0
      %1143 = vmatprep.subr.mxu0 0.0
      %1144 = vmatpush1.msra.mxu0 0.0
      %1145 = vmatprep.subr.mxu0 0.0
      %1146 = vmatpush1.msra.mxu0 0.0
      %1147 = vmatprep.subr.mxu0 0.0
      %1148 = vmatpush1.msra.mxu0 0.0
      %1149 = vmatprep.subr.mxu0 0.0
      %1150 = vmatpush1.msra.mxu0 0.0
      %1151 = vmatprep.subr.mxu0 0.0
      %1152 = vmatpush1.msra.mxu0 0.0
      %1153 = vmatprep.subr.mxu0 0.0
      %1154 = vmatpush1.msra.mxu0 0.0
      %1155 = vmatprep.subr.mxu0 0.0
      %1156 = vmatpush1.msra.mxu0 0.0
      %1157 = vmatprep.subr.mxu0 0.0
      %1158 = vmatpush1.msra.mxu0 0.0
      %1159 = vmatprep.subr.mxu0 0.0
      %1160 = vmatpush1.msra.mxu0 0.0
      %1161 = vmatprep.subr.mxu0 0.0
      %1162 = vmatpush1.msra.mxu0 0.0
      %1163 = vmatprep.subr.mxu0 0.0
      %1164 = vmatpush1.msra.mxu0 0.0
      %1165 = vmatprep.subr.mxu0 0.0
      %1166 = vmatpush1.msra.mxu0 0.0
      %1167 = vmatprep.subr.mxu0 0.0
      %1168 = vmatpush1.msra.mxu0 0.0
      %1169 = vmatprep.subr.mxu0 0.0
      %1170 = vmatpush1.msra.mxu0 0.0
      %1171 = vmatprep.subr.mxu0 0.0
      %1172 = vmatpush1.msra.mxu0 0.0
      %1173 = vmatprep.subr.mxu0 0.0
      %1174 = vmatpush1.msra.mxu0 0.0
      %1175 = vmatprep.subr.mxu0 0.0
      %1176 = vmatpush1.msra.mxu0 0.0
      %1177 = vmatprep.subr.mxu0 0.0
      %1178 = vmatpush1.msra.mxu0 0.0
      %1179 = vmatprep.subr.mxu0 0.0
      %1180 = vmatpush1.msra.mxu0 0.0
      %1181 = vmatprep.subr.mxu0 0.0
      %1182 = vmatpush1.msra.mxu0 0.0
      %1183 = vmatprep.subr.mxu0 0.0
      %1184 = vmatpush1.msra.mxu0 0.0
      %1185 = vmatprep.subr.mxu0 0.0
      %1186 = vmatpush1.msra.mxu0 0.0
      %1187 = vmatprep.subr.mxu0 0.0
      %1188 = vmatpush1.msra.mxu0 0.0
      %1189 = vmatprep.subr.mxu0 0.0
      %1190 = vmatpush1.msra.mxu0 0.0
      %1191 = vmatprep.mubr.f32.mxu0 0.0
      %1192 = vmatmul.mubr.f32.gmra.mrb[0].mxu0 %v1125
      %v1193 = vpop.f32.mrb[0].mxu0
      %v1194 = vadd.f32 0.0, %v1193
      %v1195 = vpop.f32.mrb[0].mxu0
      %1196 = vdwg.mxu0
      %s1197 = scalar_lea.vmem %s4, 768
      %v1198 = vld [vmem:[%s1197] sm:$0xff]
      %v1199 = vld [vmem:[%s1197 + $0x8] sm:$0xff]
      %v1200 = vld [vmem:[%s1197 + $0x10] sm:$0xff]
      %v1201 = vld [vmem:[%s1197 + $0x18] sm:$0xff]
      %v1202 = vld [vmem:[%s1197 + $0x20] sm:$0xff]
      %v1203 = vld [vmem:[%s1197 + $0x28] sm:$0xff]
      %v1204 = vld [vmem:[%s1197 + $0x30] sm:$0xff]
      %v1205 = vld [vmem:[%s1197 + $0x38] sm:$0xff]
      %v1206 = vld [vmem:[%s1197 + $0x40] sm:$0xff]
      %v1207 = vld [vmem:[%s1197 + $0x48] sm:$0xff]
      %v1208 = vld [vmem:[%s1197 + $0x50] sm:$0xff]
      %v1209 = vld [vmem:[%s1197 + $0x58] sm:$0xff]
      %v1210 = vld [vmem:[%s1197 + $0x60] sm:$0xff]
      %v1211 = vld [vmem:[%s1197 + $0x68] sm:$0xff]
      %v1212 = vld [vmem:[%s1197 + $0x70] sm:$0xff]
      %v1213 = vld [vmem:[%s1197 + $0x78] sm:$0xff]
      %v1214 = vld [vmem:[%s1197 + $0x80] sm:$0xff]
      %v1215 = vld [vmem:[%s1197 + $0x88] sm:$0xff]
      %v1216 = vld [vmem:[%s1197 + $0x90] sm:$0xff]
      %v1217 = vld [vmem:[%s1197 + $0x98] sm:$0xff]
      %v1218 = vld [vmem:[%s1197 + $0xa0] sm:$0xff]
      %v1219 = vld [vmem:[%s1197 + $0xa8] sm:$0xff]
      %v1220 = vld [vmem:[%s1197 + $0xb0] sm:$0xff]
      %v1221 = vld [vmem:[%s1197 + $0xb8] sm:$0xff]
      %v1222 = vld [vmem:[%s1197 + $0xc0] sm:$0xff]
      %v1223 = vld [vmem:[%s1197 + $0xc8] sm:$0xff]
      %v1224 = vld [vmem:[%s1197 + $0xd0] sm:$0xff]
      %v1225 = vld [vmem:[%s1197 + $0xd8] sm:$0xff]
      %v1226 = vld [vmem:[%s1197 + $0xe0] sm:$0xff]
      %v1227 = vld [vmem:[%s1197 + $0xe8] sm:$0xff]
      %v1228 = vld [vmem:[%s1197 + $0xf0] sm:$0xff]
      %v1229 = vld [vmem:[%s1197 + $0xf8] sm:$0xff]
      %v1231 = vsel %vm574, %v1194, 0
      %1233 = vmatprep.subr.mxu0 %v1199
      %1234 = vmatpush1.msra.mxu0 %v1198
      %1235 = vmatprep.subr.mxu0 %v1203
      %1236 = vmatpush1.msra.mxu0 %v1202
      %1237 = vmatprep.subr.mxu0 %v1207
      %1238 = vmatpush1.msra.mxu0 %v1206
      %1239 = vmatprep.subr.mxu0 %v1211
      %1240 = vmatpush1.msra.mxu0 %v1210
      %1241 = vmatprep.subr.mxu0 %v1215
      %1242 = vmatpush1.msra.mxu0 %v1214
      %1243 = vmatprep.subr.mxu0 %v1219
      %1244 = vmatpush1.msra.mxu0 %v1218
      %1245 = vmatprep.subr.mxu0 %v1223
      %1246 = vmatpush1.msra.mxu0 %v1222
      %1247 = vmatprep.subr.mxu0 %v1227
      %1248 = vmatpush1.msra.mxu0 %v1226
      %1249 = vmatprep.subr.mxu0 0.0
      %1250 = vmatpush1.msra.mxu0 0.0
      %1251 = vmatprep.subr.mxu0 0.0
      %1252 = vmatpush1.msra.mxu0 0.0
      %1253 = vmatprep.subr.mxu0 0.0
      %1254 = vmatpush1.msra.mxu0 0.0
      %1255 = vmatprep.subr.mxu0 0.0
      %1256 = vmatpush1.msra.mxu0 0.0
      %1257 = vmatprep.subr.mxu0 0.0
      %1258 = vmatpush1.msra.mxu0 0.0
      %1259 = vmatprep.subr.mxu0 0.0
      %1260 = vmatpush1.msra.mxu0 0.0
      %1261 = vmatprep.subr.mxu0 0.0
      %1262 = vmatpush1.msra.mxu0 0.0
      %1263 = vmatprep.subr.mxu0 0.0
      %1264 = vmatpush1.msra.mxu0 0.0
      %1265 = vmatprep.subr.mxu0 0.0
      %1266 = vmatpush1.msra.mxu0 0.0
      %1267 = vmatprep.subr.mxu0 0.0
      %1268 = vmatpush1.msra.mxu0 0.0
      %1269 = vmatprep.subr.mxu0 0.0
      %1270 = vmatpush1.msra.mxu0 0.0
      %1271 = vmatprep.subr.mxu0 0.0
      %1272 = vmatpush1.msra.mxu0 0.0
      %1273 = vmatprep.subr.mxu0 0.0
      %1274 = vmatpush1.msra.mxu0 0.0
      %1275 = vmatprep.subr.mxu0 0.0
      %1276 = vmatpush1.msra.mxu0 0.0
      %1277 = vmatprep.subr.mxu0 0.0
      %1278 = vmatpush1.msra.mxu0 0.0
      %1279 = vmatprep.subr.mxu0 0.0
      %1280 = vmatpush1.msra.mxu0 0.0
      %1281 = vmatprep.subr.mxu0 0.0
      %1282 = vmatpush1.msra.mxu0 0.0
      %1283 = vmatprep.subr.mxu0 0.0
      %1284 = vmatpush1.msra.mxu0 0.0
      %1285 = vmatprep.subr.mxu0 0.0
      %1286 = vmatpush1.msra.mxu0 0.0
      %1287 = vmatprep.subr.mxu0 0.0
      %1288 = vmatpush1.msra.mxu0 0.0
      %1289 = vmatprep.subr.mxu0 0.0
      %1290 = vmatpush1.msra.mxu0 0.0
      %1291 = vmatprep.subr.mxu0 0.0
      %1292 = vmatpush1.msra.mxu0 0.0
      %1293 = vmatprep.subr.mxu0 0.0
      %1294 = vmatpush1.msra.mxu0 0.0
      %1295 = vmatprep.subr.mxu0 0.0
      %1296 = vmatpush1.msra.mxu0 0.0
      %1297 = vmatprep.mubr.f32.mxu0 0.0
      %1298 = vmatmul.mubr.f32.gmra.mrb[0].mxu0 %v1231
      %v1299 = vpop.f32.mrb[0].mxu0
      %v1300 = vadd.f32 0.0, %v1299
      %v1301 = vpop.f32.mrb[0].mxu0
      %v1302 = vadd.f32 0.0, %v1301
      %1303 = vdwg.mxu0
      %1304 = vmatprep.subr.mxu0 %v1201
      %1305 = vmatpush1.msra.mxu0 %v1200
      %1306 = vmatprep.subr.mxu0 %v1205
      %1307 = vmatpush1.msra.mxu0 %v1204
      %1308 = vmatprep.subr.mxu0 %v1209
      %1309 = vmatpush1.msra.mxu0 %v1208
      %1310 = vmatprep.subr.mxu0 %v1213
      %1311 = vmatpush1.msra.mxu0 %v1212
      %1312 = vmatprep.subr.mxu0 %v1217
      %1313 = vmatpush1.msra.mxu0 %v1216
      %1314 = vmatprep.subr.mxu0 %v1221
      %1315 = vmatpush1.msra.mxu0 %v1220
      %1316 = vmatprep.subr.mxu0 %v1225
      %1317 = vmatpush1.msra.mxu0 %v1224
      %1318 = vmatprep.subr.mxu0 %v1229
      %1319 = vmatpush1.msra.mxu0 %v1228
      %1320 = vmatprep.subr.mxu0 0.0
      %1321 = vmatpush1.msra.mxu0 0.0
      %1322 = vmatprep.subr.mxu0 0.0
      %1323 = vmatpush1.msra.mxu0 0.0
      %1324 = vmatprep.subr.mxu0 0.0
      %1325 = vmatpush1.msra.mxu0 0.0
      %1326 = vmatprep.subr.mxu0 0.0
      %1327 = vmatpush1.msra.mxu0 0.0
      %1328 = vmatprep.subr.mxu0 0.0
      %1329 = vmatpush1.msra.mxu0 0.0
      %1330 = vmatprep.subr.mxu0 0.0
      %1331 = vmatpush1.msra.mxu0 0.0
      %1332 = vmatprep.subr.mxu0 0.0
      %1333 = vmatpush1.msra.mxu0 0.0
      %1334 = vmatprep.subr.mxu0 0.0
      %1335 = vmatpush1.msra.mxu0 0.0
      %1336 = vmatprep.subr.mxu0 0.0
      %1337 = vmatpush1.msra.mxu0 0.0
      %1338 = vmatprep.subr.mxu0 0.0
      %1339 = vmatpush1.msra.mxu0 0.0
      %1340 = vmatprep.subr.mxu0 0.0
      %1341 = vmatpush1.msra.mxu0 0.0
      %1342 = vmatprep.subr.mxu0 0.0
      %1343 = vmatpush1.msra.mxu0 0.0
      %1344 = vmatprep.subr.mxu0 0.0
      %1345 = vmatpush1.msra.mxu0 0.0
      %1346 = vmatprep.subr.mxu0 0.0
      %1347 = vmatpush1.msra.mxu0 0.0
      %1348 = vmatprep.subr.mxu0 0.0
      %1349 = vmatpush1.msra.mxu0 0.0
      %1350 = vmatprep.subr.mxu0 0.0
      %1351 = vmatpush1.msra.mxu0 0.0
      %1352 = vmatprep.subr.mxu0 0.0
      %1353 = vmatpush1.msra.mxu0 0.0
      %1354 = vmatprep.subr.mxu0 0.0
      %1355 = vmatpush1.msra.mxu0 0.0
      %1356 = vmatprep.subr.mxu0 0.0
      %1357 = vmatpush1.msra.mxu0 0.0
      %1358 = vmatprep.subr.mxu0 0.0
      %1359 = vmatpush1.msra.mxu0 0.0
      %1360 = vmatprep.subr.mxu0 0.0
      %1361 = vmatpush1.msra.mxu0 0.0
      %1362 = vmatprep.subr.mxu0 0.0
      %1363 = vmatpush1.msra.mxu0 0.0
      %1364 = vmatprep.subr.mxu0 0.0
      %1365 = vmatpush1.msra.mxu0 0.0
      %1366 = vmatprep.subr.mxu0 0.0
      %1367 = vmatpush1.msra.mxu0 0.0
      %1368 = vmatprep.mubr.f32.mxu0 0.0
      %1369 = vmatmul.mubr.f32.gmra.mrb[0].mxu0 %v1231
      %v1370 = vpop.f32.mrb[0].mxu0
      %v1371 = vadd.f32 0.0, %v1370
      %v1372 = vpop.f32.mrb[0].mxu0
      %v1373 = vadd.f32 0.0, %v1372
      %1374 = vdwg.mxu0
      %v1375 = vadd.f32 %v1118, %v1300
      %v1376 = vadd.f32 %v1119, %v1302
      %v1377 = vadd.f32 %v1120, %v1371
      %v1378 = vadd.f32 %v1121, %v1373
      %v1383 = vcombine.low %v1375, %v1376
      %v1384 = vcombine.low %v1377, %v1378
      %1387 = vst [vmem:[#allocation2] sm:$0xff] %v1383
      %vm1388 = vcmask 1043456
      %vm1389 = vcmask 392196
      %vm1390 = vmor %vm1389, %vm1388
      %1391 = vst.msk [vmem:[#allocation2 + $0x8] sm:$0xff] %vm1390, %v1384
      %v1392 = vld [vmem:[%s342] sm:$0xff]
      %v1393 = vld [vmem:[%s342 + $0x8] sm:$0xf]
      %v1395 = vcombine.high %v1392, %v1392
      %1397 = vst [vmem:[#allocation3] sm:$0xf] %v1392
      %1398 = vst [vmem:[#allocation3 + $0x8] sm:$0xf] %v1395
      %1399 = vst [vmem:[#allocation3 + $0x10] sm:$0xf] %v1393
      %v1400 = vld [vmem:[#allocation2] sm:$0xff]
      %v1401 = vld [vmem:[#allocation2 + $0x8] sm:$0xf]
      %v1404 = vcombine.low %v1400, %v1400
      %v1405 = vcombine.low %v1401, %v1401
      %1408 = vst [vmem:[#allocation3] sm:$0xf0] %v1404
      %1409 = vst [vmem:[#allocation3 + $0x8] sm:$0xf0] %v1400
      %1410 = vst [vmem:[#allocation3 + $0x10] sm:$0xf0] %v1405
      %v1411 = vld [vmem:[%s342] sm:$0xff]
      %v1412 = vld [vmem:[%s342 + $0x8] sm:$0xff]
      %v1415 = vcombine.high %v1411, %v1411
      %v1416 = vcombine.high %v1412, %v1412
      %1417 = vrot.lane.b32.xlu0 %v1411, 127
      %v1418 = vpop.permute.xlu0 %1417
      %1419 = vrot.lane.b32.xlu0 %v1415, 127
      %v1420 = vpop.permute.xlu0 %1419
      %1421 = vrot.lane.b32.xlu0 %v1412, 127
      %v1422 = vpop.permute.xlu0 %1421
      %1423 = vrot.lane.b32.xlu0 %v1416, 127
      %v1424 = vpop.permute.xlu0 %1423
      %vm1425 = vcmask 1039360
      %v1426 = vsel %vm1425, %v1418, %v1420
      %v1427 = vsel %vm1425, %v1420, %v1422
      %v1428 = vsel %vm1425, %v1422, %v1424
      %1432 = vst [vmem:[#allocation3 + $0x18] sm:$0xf] %v1426
      %1433 = vst [vmem:[#allocation3 + $0x20] sm:$0xf] %v1427
      %1434 = vst [vmem:[#allocation3 + $0x28] sm:$0xf] %v1428
      %v1435 = vld [vmem:[#allocation2] sm:$0xff]
      %v1436 = vld [vmem:[#allocation2 + $0x8] sm:$0xff]
      %v1439 = vcombine.low %v1435, %v1435
      %v1440 = vcombine.low %v1436, %v1436
      %1441 = vrot.lane.b32.xlu0 %v1439, 127
      %v1442 = vpop.permute.xlu0 %1441
      %1443 = vrot.lane.b32.xlu0 %v1435, 127
      %v1444 = vpop.permute.xlu0 %1443
      %1445 = vrot.lane.b32.xlu0 %v1440, 127
      %v1446 = vpop.permute.xlu0 %1445
      %1447 = vrot.lane.b32.xlu0 %v1436, 127
      %v1448 = vpop.permute.xlu0 %1447
      %v1449 = vsel %vm1425, %v1442, %v1444
      %v1450 = vsel %vm1425, %v1444, %v1446
      %v1451 = vsel %vm1425, %v1446, %v1448
      %1455 = vst [vmem:[#allocation3 + $0x18] sm:$0xf0] %v1449
      %1456 = vst [vmem:[#allocation3 + $0x20] sm:$0xf0] %v1450
      %1457 = vst [vmem:[#allocation3 + $0x28] sm:$0xf0] %v1451
      %v1458 = vld [vmem:[%s342] sm:$0xff]
      %v1459 = vld [vmem:[%s342 + $0x8] sm:$0xff]
      %v1462 = vcombine.high %v1458, %v1458
      %v1463 = vcombine.high %v1459, %v1459
      %1464 = vrot.lane.b32.xlu0 %v1458, 126
      %v1465 = vpop.permute.xlu0 %1464
      %1466 = vrot.lane.b32.xlu0 %v1462, 126
      %v1467 = vpop.permute.xlu0 %1466
      %1468 = vrot.lane.b32.xlu0 %v1459, 126
      %v1469 = vpop.permute.xlu0 %1468
      %1470 = vrot.lane.b32.xlu0 %v1463, 126
      %v1471 = vpop.permute.xlu0 %1470
      %vm1472 = vcmask 1031168
      %v1473 = vsel %vm1472, %v1465, %v1467
      %v1474 = vsel %vm1472, %v1467, %v1469
      %v1475 = vsel %vm1472, %v1469, %v1471
      %1479 = vst [vmem:[#allocation3 + $0x30] sm:$0xf] %v1473
      %1480 = vst [vmem:[#allocation3 + $0x38] sm:$0xf] %v1474
      %1481 = vst [vmem:[#allocation3 + $0x40] sm:$0xf] %v1475
      %v1482 = vld [vmem:[#allocation2] sm:$0xff]
      %v1483 = vld [vmem:[#allocation2 + $0x8] sm:$0xff]
      %v1486 = vcombine.low %v1482, %v1482
      %v1487 = vcombine.low %v1483, %v1483
      %1488 = vrot.lane.b32.xlu0 %v1486, 126
      %v1489 = vpop.permute.xlu0 %1488
      %1490 = vrot.lane.b32.xlu0 %v1482, 126
      %v1491 = vpop.permute.xlu0 %1490
      %1492 = vrot.lane.b32.xlu0 %v1487, 126
      %v1493 = vpop.permute.xlu0 %1492
      %1494 = vrot.lane.b32.xlu0 %v1483, 126
      %v1495 = vpop.permute.xlu0 %1494
      %v1496 = vsel %vm1472, %v1489, %v1491
      %v1497 = vsel %vm1472, %v1491, %v1493
      %v1498 = vsel %vm1472, %v1493, %v1495
      %1502 = vst [vmem:[#allocation3 + $0x30] sm:$0xf0] %v1496
      %1503 = vst [vmem:[#allocation3 + $0x38] sm:$0xf0] %v1497
      %1504 = vst [vmem:[#allocation3 + $0x40] sm:$0xf0] %v1498
      %v1505 = vld [vmem:[%s342] sm:$0xff]
      %v1506 = vld [vmem:[%s342 + $0x8] sm:$0xff]
      %v1509 = vcombine.high %v1505, %v1505
      %v1510 = vcombine.high %v1506, %v1506
      %1511 = vrot.lane.b32.xlu0 %v1505, 110
      %v1512 = vpop.permute.xlu0 %1511
      %1513 = vrot.lane.b32.xlu0 %v1509, 110
      %v1514 = vpop.permute.xlu0 %1513
      %1515 = vrot.lane.b32.xlu0 %v1506, 110
      %v1516 = vpop.permute.xlu0 %1515
      %1517 = vrot.lane.b32.xlu0 %v1510, 110
      %v1518 = vpop.permute.xlu0 %1517
      %vm1519 = vcmask 900096
      %v1520 = vsel %vm1519, %v1512, %v1514
      %v1521 = vsel %vm1519, %v1514, %v1516
      %v1522 = vsel %vm1519, %v1516, %v1518
      %1526 = vst [vmem:[#allocation3 + $0x48] sm:$0xf] %v1520
      %1527 = vst [vmem:[#allocation3 + $0x50] sm:$0xf] %v1521
      %1528 = vst [vmem:[#allocation3 + $0x58] sm:$0xf] %v1522
      %v1529 = vld [vmem:[#allocation2] sm:$0xff]
      %v1530 = vld [vmem:[#allocation2 + $0x8] sm:$0xff]
      %v1533 = vcombine.low %v1529, %v1529
      %v1534 = vcombine.low %v1530, %v1530
      %1535 = vrot.lane.b32.xlu0 %v1533, 110
      %v1536 = vpop.permute.xlu0 %1535
      %1537 = vrot.lane.b32.xlu0 %v1529, 110
      %v1538 = vpop.permute.xlu0 %1537
      %1539 = vrot.lane.b32.xlu0 %v1534, 110
      %v1540 = vpop.permute.xlu0 %1539
      %1541 = vrot.lane.b32.xlu0 %v1530, 110
      %v1542 = vpop.permute.xlu0 %1541
      %v1543 = vsel %vm1519, %v1536, %v1538
      %v1544 = vsel %vm1519, %v1538, %v1540
      %v1545 = vsel %vm1519, %v1540, %v1542
      %1549 = vst [vmem:[#allocation3 + $0x48] sm:$0xf0] %v1543
      %1550 = vst [vmem:[#allocation3 + $0x50] sm:$0xf0] %v1544
      %1551 = vst [vmem:[#allocation3 + $0x58] sm:$0xf0] %v1545
      %v1552 = vld [vmem:[%s342] sm:$0xff]
      %v1553 = vld [vmem:[%s342 + $0x8] sm:$0xff]
      %v1556 = vcombine.high %v1552, %v1552
      %v1557 = vcombine.high %v1553, %v1553
      %1558 = vrot.lane.b32.xlu0 %v1552, 109
      %v1559 = vpop.permute.xlu0 %1558
      %1560 = vrot.lane.b32.xlu0 %v1556, 109
      %v1561 = vpop.permute.xlu0 %1560
      %1562 = vrot.lane.b32.xlu0 %v1553, 109
      %v1563 = vpop.permute.xlu0 %1562
      %1564 = vrot.lane.b32.xlu0 %v1557, 109
      %v1565 = vpop.permute.xlu0 %1564
      %vm1566 = vcmask 891904
      %v1567 = vsel %vm1566, %v1559, %v1561
      %v1568 = vsel %vm1566, %v1561, %v1563
      %v1569 = vsel %vm1566, %v1563, %v1565
      %1573 = vst [vmem:[#allocation3 + $0x60] sm:$0xf] %v1567
      %1574 = vst [vmem:[#allocation3 + $0x68] sm:$0xf] %v1568
      %1575 = vst [vmem:[#allocation3 + $0x70] sm:$0xf] %v1569
      %v1576 = vld [vmem:[#allocation2] sm:$0xff]
      %v1577 = vld [vmem:[#allocation2 + $0x8] sm:$0xff]
      %v1580 = vcombine.low %v1576, %v1576
      %v1581 = vcombine.low %v1577, %v1577
      %1582 = vrot.lane.b32.xlu0 %v1580, 109
      %v1583 = vpop.permute.xlu0 %1582
      %1584 = vrot.lane.b32.xlu0 %v1576, 109
      %v1585 = vpop.permute.xlu0 %1584
      %1586 = vrot.lane.b32.xlu0 %v1581, 109
      %v1587 = vpop.permute.xlu0 %1586
      %1588 = vrot.lane.b32.xlu0 %v1577, 109
      %v1589 = vpop.permute.xlu0 %1588
      %v1590 = vsel %vm1566, %v1583, %v1585
      %v1591 = vsel %vm1566, %v1585, %v1587
      %v1592 = vsel %vm1566, %v1587, %v1589
      %1596 = vst [vmem:[#allocation3 + $0x60] sm:$0xf0] %v1590
      %1597 = vst [vmem:[#allocation3 + $0x68] sm:$0xf0] %v1591
      %1598 = vst [vmem:[#allocation3 + $0x70] sm:$0xf0] %v1592
      %v1599 = vld [vmem:[%s342] sm:$0xff]
      %v1600 = vld [vmem:[%s342 + $0x8] sm:$0xff]
      %v1603 = vcombine.high %v1599, %v1599
      %v1604 = vcombine.high %v1600, %v1600
      %1605 = vrot.lane.b32.xlu0 %v1599, 108
      %v1606 = vpop.permute.xlu0 %1605
      %1607 = vrot.lane.b32.xlu0 %v1603, 108
      %v1608 = vpop.permute.xlu0 %1607
      %1609 = vrot.lane.b32.xlu0 %v1600, 108
      %v1610 = vpop.permute.xlu0 %1609
      %1611 = vrot.lane.b32.xlu0 %v1604, 108
      %v1612 = vpop.permute.xlu0 %1611
      %vm1613 = vcmask 883712
      %v1614 = vsel %vm1613, %v1606, %v1608
      %v1615 = vsel %vm1613, %v1608, %v1610
      %v1616 = vsel %vm1613, %v1610, %v1612
      %1620 = vst [vmem:[#allocation3 + $0x78] sm:$0xf] %v1614
      %1621 = vst [vmem:[#allocation3 + $0x80] sm:$0xf] %v1615
      %1622 = vst [vmem:[#allocation3 + $0x88] sm:$0xf] %v1616
      %v1623 = vld [vmem:[#allocation2] sm:$0xff]
      %v1624 = vld [vmem:[#allocation2 + $0x8] sm:$0xff]
      %v1627 = vcombine.low %v1623, %v1623
      %v1628 = vcombine.low %v1624, %v1624
      %1629 = vrot.lane.b32.xlu0 %v1627, 108
      %v1630 = vpop.permute.xlu0 %1629
      %1631 = vrot.lane.b32.xlu0 %v1623, 108
      %v1632 = vpop.permute.xlu0 %1631
      %1633 = vrot.lane.b32.xlu0 %v1628, 108
      %v1634 = vpop.permute.xlu0 %1633
      %1635 = vrot.lane.b32.xlu0 %v1624, 108
      %v1636 = vpop.permute.xlu0 %1635
      %v1637 = vsel %vm1613, %v1630, %v1632
      %v1638 = vsel %vm1613, %v1632, %v1634
      %v1639 = vsel %vm1613, %v1634, %v1636
      %1643 = vst [vmem:[#allocation3 + $0x78] sm:$0xf0] %v1637
      %1644 = vst [vmem:[#allocation3 + $0x80] sm:$0xf0] %v1638
      %1645 = vst [vmem:[#allocation3 + $0x88] sm:$0xf0] %v1639
      %v1646 = vld [vmem:[%s342] sm:$0xff]
      %v1647 = vld [vmem:[%s342 + $0x8] sm:$0xff]
      %v1650 = vcombine.high %v1646, %v1646
      %v1651 = vcombine.high %v1647, %v1647
      %1652 = vrot.lane.b32.xlu0 %v1646, 92
      %v1653 = vpop.permute.xlu0 %1652
      %1654 = vrot.lane.b32.xlu0 %v1650, 92
      %v1655 = vpop.permute.xlu0 %1654
      %1656 = vrot.lane.b32.xlu0 %v1647, 92
      %v1657 = vpop.permute.xlu0 %1656
      %1658 = vrot.lane.b32.xlu0 %v1651, 92
      %v1659 = vpop.permute.xlu0 %1658
      %vm1660 = vcmask 752640
      %v1661 = vsel %vm1660, %v1653, %v1655
      %v1662 = vsel %vm1660, %v1655, %v1657
      %v1663 = vsel %vm1660, %v1657, %v1659
      %1667 = vst [vmem:[#allocation3 + $0x90] sm:$0xf] %v1661
      %1668 = vst [vmem:[#allocation3 + $0x98] sm:$0xf] %v1662
      %1669 = vst [vmem:[#allocation3 + $0xa0] sm:$0xf] %v1663
      %v1670 = vld [vmem:[#allocation2] sm:$0xff]
      %v1671 = vld [vmem:[#allocation2 + $0x8] sm:$0xff]
      %v1674 = vcombine.low %v1670, %v1670
      %v1675 = vcombine.low %v1671, %v1671
      %1676 = vrot.lane.b32.xlu0 %v1674, 92
      %v1677 = vpop.permute.xlu0 %1676
      %1678 = vrot.lane.b32.xlu0 %v1670, 92
      %v1679 = vpop.permute.xlu0 %1678
      %1680 = vrot.lane.b32.xlu0 %v1675, 92
      %v1681 = vpop.permute.xlu0 %1680
      %1682 = vrot.lane.b32.xlu0 %v1671, 92
      %v1683 = vpop.permute.xlu0 %1682
      %v1684 = vsel %vm1660, %v1677, %v1679
      %v1685 = vsel %vm1660, %v1679, %v1681
      %v1686 = vsel %vm1660, %v1681, %v1683
      %1690 = vst [vmem:[#allocation3 + $0x90] sm:$0xf0] %v1684
      %1691 = vst [vmem:[#allocation3 + $0x98] sm:$0xf0] %v1685
      %1692 = vst [vmem:[#allocation3 + $0xa0] sm:$0xf0] %v1686
      %v1693 = vld [vmem:[%s342] sm:$0xff]
      %v1694 = vld [vmem:[%s342 + $0x8] sm:$0xff]
      %v1697 = vcombine.high %v1693, %v1693
      %v1698 = vcombine.high %v1694, %v1694
      %1699 = vrot.lane.b32.xlu0 %v1693, 91
      %v1700 = vpop.permute.xlu0 %1699
      %1701 = vrot.lane.b32.xlu0 %v1697, 91
      %v1702 = vpop.permute.xlu0 %1701
      %1703 = vrot.lane.b32.xlu0 %v1694, 91
      %v1704 = vpop.permute.xlu0 %1703
      %1705 = vrot.lane.b32.xlu0 %v1698, 91
      %v1706 = vpop.permute.xlu0 %1705
      %vm1707 = vcmask 744448
      %v1708 = vsel %vm1707, %v1700, %v1702
      %v1709 = vsel %vm1707, %v1702, %v1704
      %v1710 = vsel %vm1707, %v1704, %v1706
      %1714 = vst [vmem:[#allocation3 + $0xa8] sm:$0xf] %v1708
      %1715 = vst [vmem:[#allocation3 + $0xb0] sm:$0xf] %v1709
      %1716 = vst [vmem:[#allocation3 + $0xb8] sm:$0xf] %v1710
      %v1717 = vld [vmem:[#allocation2] sm:$0xff]
      %v1718 = vld [vmem:[#allocation2 + $0x8] sm:$0xff]
      %v1721 = vcombine.low %v1717, %v1717
      %v1722 = vcombine.low %v1718, %v1718
      %1723 = vrot.lane.b32.xlu0 %v1721, 91
      %v1724 = vpop.permute.xlu0 %1723
      %1725 = vrot.lane.b32.xlu0 %v1717, 91
      %v1726 = vpop.permute.xlu0 %1725
      %1727 = vrot.lane.b32.xlu0 %v1722, 91
      %v1728 = vpop.permute.xlu0 %1727
      %1729 = vrot.lane.b32.xlu0 %v1718, 91
      %v1730 = vpop.permute.xlu0 %1729
      %v1731 = vsel %vm1707, %v1724, %v1726
      %v1732 = vsel %vm1707, %v1726, %v1728
      %v1733 = vsel %vm1707, %v1728, %v1730
      %1737 = vst [vmem:[#allocation3 + $0xa8] sm:$0xf0] %v1731
      %1738 = vst [vmem:[#allocation3 + $0xb0] sm:$0xf0] %v1732
      %1739 = vst [vmem:[#allocation3 + $0xb8] sm:$0xf0] %v1733
      %v1740 = vld [vmem:[%s342] sm:$0xff]
      %v1741 = vld [vmem:[%s342 + $0x8] sm:$0xff]
      %v1744 = vcombine.high %v1740, %v1740
      %v1745 = vcombine.high %v1741, %v1741
      %1746 = vrot.lane.b32.xlu0 %v1740, 90
      %v1747 = vpop.permute.xlu0 %1746
      %1748 = vrot.lane.b32.xlu0 %v1744, 90
      %v1749 = vpop.permute.xlu0 %1748
      %1750 = vrot.lane.b32.xlu0 %v1741, 90
      %v1751 = vpop.permute.xlu0 %1750
      %1752 = vrot.lane.b32.xlu0 %v1745, 90
      %v1753 = vpop.permute.xlu0 %1752
      %vm1754 = vcmask 736256
      %v1755 = vsel %vm1754, %v1747, %v1749
      %v1756 = vsel %vm1754, %v1749, %v1751
      %v1757 = vsel %vm1754, %v1751, %v1753
      %1761 = vst [vmem:[#allocation3 + $0xc0] sm:$0xf] %v1755
      %1762 = vst [vmem:[#allocation3 + $0xc8] sm:$0xf] %v1756
      %1763 = vst [vmem:[#allocation3 + $0xd0] sm:$0xf] %v1757
      %v1764 = vld [vmem:[#allocation2] sm:$0xff]
      %v1765 = vld [vmem:[#allocation2 + $0x8] sm:$0xff]
      %v1768 = vcombine.low %v1764, %v1764
      %v1769 = vcombine.low %v1765, %v1765
      %1770 = vrot.lane.b32.xlu0 %v1768, 90
      %v1771 = vpop.permute.xlu0 %1770
      %1772 = vrot.lane.b32.xlu0 %v1764, 90
      %v1773 = vpop.permute.xlu0 %1772
      %1774 = vrot.lane.b32.xlu0 %v1769, 90
      %v1775 = vpop.permute.xlu0 %1774
      %1776 = vrot.lane.b32.xlu0 %v1765, 90
      %v1777 = vpop.permute.xlu0 %1776
      %v1778 = vsel %vm1754, %v1771, %v1773
      %v1779 = vsel %vm1754, %v1773, %v1775
      %v1780 = vsel %vm1754, %v1775, %v1777
      %1784 = vst [vmem:[#allocation3 + $0xc0] sm:$0xf0] %v1778
      %1785 = vst [vmem:[#allocation3 + $0xc8] sm:$0xf0] %v1779
      %1786 = vst [vmem:[#allocation3 + $0xd0] sm:$0xf0] %v1780
      %v1787 = vld [vmem:[%s5] sm:$0xf]
      %v1788 = vld [vmem:[#allocation3] sm:$0xff]
      %v1789 = vld [vmem:[#allocation3 + $0x8] sm:$0xff]
      %v1790 = vld [vmem:[#allocation3 + $0x10] sm:$0xff]
      %v1791 = vld [vmem:[#allocation3 + $0x18] sm:$0xff]
      %v1792 = vld [vmem:[#allocation3 + $0x20] sm:$0xff]
      %v1793 = vld [vmem:[#allocation3 + $0x28] sm:$0xff]
      %v1794 = vld [vmem:[#allocation3 + $0x30] sm:$0xff]
      %v1795 = vld [vmem:[#allocation3 + $0x38] sm:$0xff]
      %v1796 = vld [vmem:[#allocation3 + $0x40] sm:$0xff]
      %v1797 = vld [vmem:[#allocation3 + $0x48] sm:$0xff]
      %v1798 = vld [vmem:[#allocation3 + $0x50] sm:$0xff]
      %v1799 = vld [vmem:[#allocation3 + $0x58] sm:$0xff]
      %v1800 = vld [vmem:[#allocation3 + $0x60] sm:$0xff]
      %v1801 = vld [vmem:[#allocation3 + $0x68] sm:$0xff]
      %v1802 = vld [vmem:[#allocation3 + $0x70] sm:$0xff]
      %v1803 = vld [vmem:[#allocation3 + $0x78] sm:$0xff]
      %v1804 = vld [vmem:[#allocation3 + $0x80] sm:$0xff]
      %v1805 = vld [vmem:[#allocation3 + $0x88] sm:$0xff]
      %v1806 = vld [vmem:[#allocation3 + $0x90] sm:$0xff]
      %v1807 = vld [vmem:[#allocation3 + $0x98] sm:$0xff]
      %v1808 = vld [vmem:[#allocation3 + $0xa0] sm:$0xff]
      %v1809 = vld [vmem:[#allocation3 + $0xa8] sm:$0xff]
      %v1810 = vld [vmem:[#allocation3 + $0xb0] sm:$0xff]
      %v1811 = vld [vmem:[#allocation3 + $0xb8] sm:$0xff]
      %v1812 = vld [vmem:[#allocation3 + $0xc0] sm:$0xff]
      %v1813 = vld [vmem:[#allocation3 + $0xc8] sm:$0xff]
      %v1814 = vld [vmem:[#allocation3 + $0xd0] sm:$0xff]
      %v1815 = vld [vmem:[%s6] sm:$0xf]
      %1817 = vset.pattern.permute.xlu0 0
      %1818 = vperm.xlu0 %1817, %v1815
      %v1819 = vpop.permute.xlu0 %1818
      %vm1821 = vcmask 588800
      %v1823 = vsel %vm1821, %v1787, 0
      %1825 = vmatprep.subr.mxu0 %v1789
      %1826 = vmatpush1.msra.mxu0 %v1788
      %1827 = vmatprep.subr.mxu0 %v1792
      %1828 = vmatpush1.msra.mxu0 %v1791
      %1829 = vmatprep.subr.mxu0 %v1795
      %1830 = vmatpush1.msra.mxu0 %v1794
      %1831 = vmatprep.subr.mxu0 %v1798
      %1832 = vmatpush1.msra.mxu0 %v1797
      %1833 = vmatprep.subr.mxu0 %v1801
      %1834 = vmatpush1.msra.mxu0 %v1800
      %1835 = vmatprep.subr.mxu0 %v1804
      %1836 = vmatpush1.msra.mxu0 %v1803
      %1837 = vmatprep.subr.mxu0 %v1807
      %1838 = vmatpush1.msra.mxu0 %v1806
      %1839 = vmatprep.subr.mxu0 %v1810
      %1840 = vmatpush1.msra.mxu0 %v1809
      %1841 = vmatprep.subr.mxu0 %v1813
      %1842 = vmatpush1.msra.mxu0 %v1812
      %1843 = vmatprep.subr.mxu0 0.0
      %1844 = vmatpush1.msra.mxu0 0.0
      %1845 = vmatprep.subr.mxu0 0.0
      %1846 = vmatpush1.msra.mxu0 0.0
      %1847 = vmatprep.subr.mxu0 0.0
      %1848 = vmatpush1.msra.mxu0 0.0
      %1849 = vmatprep.subr.mxu0 0.0
      %1850 = vmatpush1.msra.mxu0 0.0
      %1851 = vmatprep.subr.mxu0 0.0
      %1852 = vmatpush1.msra.mxu0 0.0
      %1853 = vmatprep.subr.mxu0 0.0
      %1854 = vmatpush1.msra.mxu0 0.0
      %1855 = vmatprep.subr.mxu0 0.0
      %1856 = vmatpush1.msra.mxu0 0.0
      %1857 = vmatprep.subr.mxu0 0.0
      %1858 = vmatpush1.msra.mxu0 0.0
      %1859 = vmatprep.subr.mxu0 0.0
      %1860 = vmatpush1.msra.mxu0 0.0
      %1861 = vmatprep.subr.mxu0 0.0
      %1862 = vmatpush1.msra.mxu0 0.0
      %1863 = vmatprep.subr.mxu0 0.0
      %1864 = vmatpush1.msra.mxu0 0.0
      %1865 = vmatprep.subr.mxu0 0.0
      %1866 = vmatpush1.msra.mxu0 0.0
      %1867 = vmatprep.subr.mxu0 0.0
      %1868 = vmatpush1.msra.mxu0 0.0
      %1869 = vmatprep.subr.mxu0 0.0
      %1870 = vmatpush1.msra.mxu0 0.0
      %1871 = vmatprep.subr.mxu0 0.0
      %1872 = vmatpush1.msra.mxu0 0.0
      %1873 = vmatprep.subr.mxu0 0.0
      %1874 = vmatpush1.msra.mxu0 0.0
      %1875 = vmatprep.subr.mxu0 0.0
      %1876 = vmatpush1.msra.mxu0 0.0
      %1877 = vmatprep.subr.mxu0 0.0
      %1878 = vmatpush1.msra.mxu0 0.0
      %1879 = vmatprep.subr.mxu0 0.0
      %1880 = vmatpush1.msra.mxu0 0.0
      %1881 = vmatprep.subr.mxu0 0.0
      %1882 = vmatpush1.msra.mxu0 0.0
      %1883 = vmatprep.subr.mxu0 0.0
      %1884 = vmatpush1.msra.mxu0 0.0
      %1885 = vmatprep.subr.mxu0 0.0
      %1886 = vmatpush1.msra.mxu0 0.0
      %1887 = vmatprep.subr.mxu0 0.0
      %1888 = vmatpush1.msra.mxu0 0.0
      %1889 = vmatprep.mubr.f32.mxu0 0.0
      %1890 = vmatmul.mubr.f32.gmra.mrb[0].mxu0 %v1823
      %v1891 = vpop.f32.mrb[0].mxu0
      %v1892 = vadd.f32 %v1819, %v1891
      %v1893 = vpop.f32.mrb[0].mxu0
      %v1894 = vadd.f32 %v1819, %v1893
      %1895 = vdwg.mxu0
      %1896 = vmatprep.subr.mxu0 0.0
      %1897 = vmatpush1.msra.mxu0 %v1790
      %1898 = vmatprep.subr.mxu0 0.0
      %1899 = vmatpush1.msra.mxu0 %v1793
      %1900 = vmatprep.subr.mxu0 0.0
      %1901 = vmatpush1.msra.mxu0 %v1796
      %1902 = vmatprep.subr.mxu0 0.0
      %1903 = vmatpush1.msra.mxu0 %v1799
      %1904 = vmatprep.subr.mxu0 0.0
      %1905 = vmatpush1.msra.mxu0 %v1802
      %1906 = vmatprep.subr.mxu0 0.0
      %1907 = vmatpush1.msra.mxu0 %v1805
      %1908 = vmatprep.subr.mxu0 0.0
      %1909 = vmatpush1.msra.mxu0 %v1808
      %1910 = vmatprep.subr.mxu0 0.0
      %1911 = vmatpush1.msra.mxu0 %v1811
      %1912 = vmatprep.subr.mxu0 0.0
      %1913 = vmatpush1.msra.mxu0 %v1814
      %1914 = vmatprep.subr.mxu0 0.0
      %1915 = vmatpush1.msra.mxu0 0.0
      %1916 = vmatprep.subr.mxu0 0.0
      %1917 = vmatpush1.msra.mxu0 0.0
      %1918 = vmatprep.subr.mxu0 0.0
      %1919 = vmatpush1.msra.mxu0 0.0
      %1920 = vmatprep.subr.mxu0 0.0
      %1921 = vmatpush1.msra.mxu0 0.0
      %1922 = vmatprep.subr.mxu0 0.0
      %1923 = vmatpush1.msra.mxu0 0.0
      %1924 = vmatprep.subr.mxu0 0.0
      %1925 = vmatpush1.msra.mxu0 0.0
      %1926 = vmatprep.subr.mxu0 0.0
      %1927 = vmatpush1.msra.mxu0 0.0
      %1928 = vmatprep.subr.mxu0 0.0
      %1929 = vmatpush1.msra.mxu0 0.0
      %1930 = vmatprep.subr.mxu0 0.0
      %1931 = vmatpush1.msra.mxu0 0.0
      %1932 = vmatprep.subr.mxu0 0.0
      %1933 = vmatpush1.msra.mxu0 0.0
      %1934 = vmatprep.subr.mxu0 0.0
      %1935 = vmatpush1.msra.mxu0 0.0
      %1936 = vmatprep.subr.mxu0 0.0
      %1937 = vmatpush1.msra.mxu0 0.0
      %1938 = vmatprep.subr.mxu0 0.0
      %1939 = vmatpush1.msra.mxu0 0.0
      %1940 = vmatprep.subr.mxu0 0.0
      %1941 = vmatpush1.msra.mxu0 0.0
      %1942 = vmatprep.subr.mxu0 0.0
      %1943 = vmatpush1.msra.mxu0 0.0
      %1944 = vmatprep.subr.mxu0 0.0
      %1945 = vmatpush1.msra.mxu0 0.0
      %1946 = vmatprep.subr.mxu0 0.0
      %1947 = vmatpush1.msra.mxu0 0.0
      %1948 = vmatprep.subr.mxu0 0.0
      %1949 = vmatpush1.msra.mxu0 0.0
      %1950 = vmatprep.subr.mxu0 0.0
      %1951 = vmatpush1.msra.mxu0 0.0
      %1952 = vmatprep.subr.mxu0 0.0
      %1953 = vmatpush1.msra.mxu0 0.0
      %1954 = vmatprep.subr.mxu0 0.0
      %1955 = vmatpush1.msra.mxu0 0.0
      %1956 = vmatprep.subr.mxu0 0.0
      %1957 = vmatpush1.msra.mxu0 0.0
      %1958 = vmatprep.subr.mxu0 0.0
      %1959 = vmatpush1.msra.mxu0 0.0
      %1960 = vmatprep.mubr.f32.mxu0 0.0
      %1961 = vmatmul.mubr.f32.gmra.mrb[0].mxu0 %v1823
      %v1962 = vpop.f32.mrb[0].mxu0
      %v1963 = vadd.f32 %v1819, %v1962
      %v1964 = vpop.f32.mrb[0].mxu0
      %1965 = vdwg.mxu0
      %v1966 = vmax.f32 %v1892, 0.0
      %v1967 = vmax.f32 %v1894, 0.0
      %v1968 = vmax.f32 %v1963, 0.0
      %v1969 = vld [vmem:[%s2] sm:$0x7]
      %v1971 = vlaneseq
      %v1972 = vshrl.u32 %v1971, 7
      %v1973 = vsub.s32 0, %v1972
      %v1974 = vrot.slane %v1969, %v1973
      %v1975 = vlaneseq
      %v1976 = vshrl.u32 %v1975, 7
      %v1977 = vsub.s32 1, %v1976
      %v1978 = vrot.slane %v1969, %v1977
      %v1979 = vlaneseq
      %v1980 = vshrl.u32 %v1979, 7
      %v1981 = vsub.s32 2, %v1980
      %v1982 = vrot.slane %v1969, %v1981
      %v1986 = vmul.f32 %v1966, %v1974
      %v1987 = vmul.f32 %v1967, %v1978
      %v1988 = vmul.f32 %v1968, %v1982
      %v1991 = vcombine.low %v1986, %v1987
      %1993 = vst [vmem:[#allocation4] sm:$0xff] %v1991
      %1994 = vst [vmem:[#allocation4 + $0x8] sm:$0xf] %v1988
      %v1995 = vld [vmem:[#allocation4] sm:$0xff]
      %v1996 = vld [vmem:[#allocation4 + $0x8] sm:$0xf]
      %v1998 = vcombine.high %v1995, %v1995
      %2000 = vst [vmem:[#allocation5] sm:$0xf] %v1995
      %2001 = vst [vmem:[#allocation5 + $0x8] sm:$0xf] %v1998
      %vm2002 = vcmask 257024
      %2003 = vst.msk [vmem:[#allocation5 + $0x10] sm:$0xf] %vm2002, %v1996
      %v2004 = vld [vmem:[#allocation4] sm:$0xff]
      %v2005 = vld [vmem:[#allocation4 + $0x8] sm:$0xf]
      %v2008 = vcombine.low %v2004, %v2004
      %v2009 = vcombine.low %v2005, %v2005
      %2010 = vrot.lane.b32.xlu0 %v2008, 127
      %v2011 = vpop.permute.xlu0 %2010
      %2012 = vrot.lane.b32.xlu0 %v2004, 127
      %v2013 = vpop.permute.xlu0 %2012
      %2014 = vrot.lane.b32.xlu0 %v2009, 127
      %v2015 = vpop.permute.xlu0 %2014
      %v2016 = vsel %vm1425, %v2011, %v2013
      %v2017 = vsel %vm1425, %v2013, %v2015
      %2021 = vst [vmem:[#allocation5] sm:$0xf0] %v2016
      %2022 = vst [vmem:[#allocation5 + $0x8] sm:$0xf0] %v2017
      %vm2023 = vcmask 261124
      %2024 = vst.msk [vmem:[#allocation5 + $0x10] sm:$0xf0] %vm2023, %v2015
      %v2025 = vld [vmem:[#allocation4] sm:$0xff]
      %v2026 = vld [vmem:[#allocation4 + $0x8] sm:$0xf]
      %v2029 = vcombine.high %v2025, %v2025
      %2030 = vrot.lane.b32.xlu0 %v2025, 126
      %v2031 = vpop.permute.xlu0 %2030
      %2032 = vrot.lane.b32.xlu0 %v2029, 126
      %v2033 = vpop.permute.xlu0 %2032
      %2034 = vrot.lane.b32.xlu0 %v2026, 126
      %v2035 = vpop.permute.xlu0 %2034
      %v2036 = vsel %vm1472, %v2031, %v2033
      %v2037 = vsel %vm1472, %v2033, %v2035
      %2041 = vst [vmem:[#allocation5 + $0x18] sm:$0xf] %v2036
      %2042 = vst [vmem:[#allocation5 + $0x20] sm:$0xf] %v2037
      %2043 = vst.msk [vmem:[#allocation5 + $0x28] sm:$0xf] %vm2002, %v2035
      %v2044 = vld [vmem:[#allocation4] sm:$0xff]
      %v2045 = vld [vmem:[#allocation4 + $0x8] sm:$0xf]
      %v2048 = vcombine.low %v2044, %v2044
      %v2049 = vcombine.low %v2045, %v2045
      %2050 = vrot.lane.b32.xlu0 %v2048, 110
      %v2051 = vpop.permute.xlu0 %2050
      %2052 = vrot.lane.b32.xlu0 %v2044, 110
      %v2053 = vpop.permute.xlu0 %2052
      %2054 = vrot.lane.b32.xlu0 %v2049, 110
      %v2055 = vpop.permute.xlu0 %2054
      %v2056 = vsel %vm1519, %v2051, %v2053
      %v2057 = vsel %vm1519, %v2053, %v2055
      %2061 = vst [vmem:[#allocation5 + $0x18] sm:$0xf0] %v2056
      %2062 = vst [vmem:[#allocation5 + $0x20] sm:$0xf0] %v2057
      %2063 = vst.msk [vmem:[#allocation5 + $0x28] sm:$0xf0] %vm2023, %v2055
      %v2064 = vld [vmem:[#allocation4] sm:$0xff]
      %v2065 = vld [vmem:[#allocation4 + $0x8] sm:$0xf]
      %v2068 = vcombine.high %v2064, %v2064
      %2069 = vrot.lane.b32.xlu0 %v2064, 109
      %v2070 = vpop.permute.xlu0 %2069
      %2071 = vrot.lane.b32.xlu0 %v2068, 109
      %v2072 = vpop.permute.xlu0 %2071
      %2073 = vrot.lane.b32.xlu0 %v2065, 109
      %v2074 = vpop.permute.xlu0 %2073
      %v2075 = vsel %vm1566, %v2070, %v2072
      %v2076 = vsel %vm1566, %v2072, %v2074
      %2080 = vst [vmem:[#allocation5 + $0x30] sm:$0xf] %v2075
      %2081 = vst [vmem:[#allocation5 + $0x38] sm:$0xf] %v2076
      %2082 = vst.msk [vmem:[#allocation5 + $0x40] sm:$0xf] %vm2002, %v2074
      %v2083 = vld [vmem:[#allocation4] sm:$0xff]
      %v2084 = vld [vmem:[#allocation4 + $0x8] sm:$0xf]
      %v2087 = vcombine.low %v2083, %v2083
      %v2088 = vcombine.low %v2084, %v2084
      %2089 = vrot.lane.b32.xlu0 %v2087, 108
      %v2090 = vpop.permute.xlu0 %2089
      %2091 = vrot.lane.b32.xlu0 %v2083, 108
      %v2092 = vpop.permute.xlu0 %2091
      %2093 = vrot.lane.b32.xlu0 %v2088, 108
      %v2094 = vpop.permute.xlu0 %2093
      %v2095 = vsel %vm1613, %v2090, %v2092
      %v2096 = vsel %vm1613, %v2092, %v2094
      %2100 = vst [vmem:[#allocation5 + $0x30] sm:$0xf0] %v2095
      %2101 = vst [vmem:[#allocation5 + $0x38] sm:$0xf0] %v2096
      %2102 = vst.msk [vmem:[#allocation5 + $0x40] sm:$0xf0] %vm2023, %v2094
      %v2103 = vld [vmem:[#allocation4] sm:$0xff]
      %v2104 = vld [vmem:[#allocation4 + $0x8] sm:$0xf]
      %v2107 = vcombine.high %v2103, %v2103
      %2108 = vrot.lane.b32.xlu0 %v2103, 92
      %v2109 = vpop.permute.xlu0 %2108
      %2110 = vrot.lane.b32.xlu0 %v2107, 92
      %v2111 = vpop.permute.xlu0 %2110
      %2112 = vrot.lane.b32.xlu0 %v2104, 92
      %v2113 = vpop.permute.xlu0 %2112
      %v2114 = vsel %vm1660, %v2109, %v2111
      %v2115 = vsel %vm1660, %v2111, %v2113
      %2119 = vst [vmem:[#allocation5 + $0x48] sm:$0xf] %v2114
      %2120 = vst [vmem:[#allocation5 + $0x50] sm:$0xf] %v2115
      %2121 = vst.msk [vmem:[#allocation5 + $0x58] sm:$0xf] %vm2002, %v2113
      %v2122 = vld [vmem:[#allocation4] sm:$0xff]
      %v2123 = vld [vmem:[#allocation4 + $0x8] sm:$0xf]
      %v2126 = vcombine.low %v2122, %v2122
      %v2127 = vcombine.low %v2123, %v2123
      %2128 = vrot.lane.b32.xlu0 %v2126, 91
      %v2129 = vpop.permute.xlu0 %2128
      %2130 = vrot.lane.b32.xlu0 %v2122, 91
      %v2131 = vpop.permute.xlu0 %2130
      %2132 = vrot.lane.b32.xlu0 %v2127, 91
      %v2133 = vpop.permute.xlu0 %2132
      %v2134 = vsel %vm1707, %v2129, %v2131
      %v2135 = vsel %vm1707, %v2131, %v2133
      %2139 = vst [vmem:[#allocation5 + $0x48] sm:$0xf0] %v2134
      %2140 = vst [vmem:[#allocation5 + $0x50] sm:$0xf0] %v2135
      %2141 = vst.msk [vmem:[#allocation5 + $0x58] sm:$0xf0] %vm2023, %v2133
      %v2142 = vld [vmem:[#allocation4] sm:$0xff]
      %v2143 = vld [vmem:[#allocation4 + $0x8] sm:$0xf]
      %v2146 = vcombine.high %v2142, %v2142
      %2147 = vrot.lane.b32.xlu0 %v2142, 90
      %v2148 = vpop.permute.xlu0 %2147
      %2149 = vrot.lane.b32.xlu0 %v2146, 90
      %v2150 = vpop.permute.xlu0 %2149
      %2151 = vrot.lane.b32.xlu0 %v2143, 90
      %v2152 = vpop.permute.xlu0 %2151
      %v2153 = vsel %vm1754, %v2148, %v2150
      %v2154 = vsel %vm1754, %v2150, %v2152
      %2158 = vst [vmem:[#allocation5 + $0x60] sm:$0xf] %v2153
      %2159 = vst [vmem:[#allocation5 + $0x68] sm:$0xf] %v2154
      %2160 = vst.msk [vmem:[#allocation5 + $0x70] sm:$0xf] %vm2002, %v2152
      %v2161 = vld [vmem:[%s7] sm:$0xf]
      %v2162 = vld [vmem:[#allocation5] sm:$0xff]
      %v2163 = vld [vmem:[#allocation5 + $0x8] sm:$0xff]
      %v2164 = vld [vmem:[#allocation5 + $0x10] sm:$0xff]
      %v2165 = vld [vmem:[#allocation5 + $0x18] sm:$0xff]
      %v2166 = vld [vmem:[#allocation5 + $0x20] sm:$0xff]
      %v2167 = vld [vmem:[#allocation5 + $0x28] sm:$0xff]
      %v2168 = vld [vmem:[#allocation5 + $0x30] sm:$0xff]
      %v2169 = vld [vmem:[#allocation5 + $0x38] sm:$0xff]
      %v2170 = vld [vmem:[#allocation5 + $0x40] sm:$0xff]
      %v2171 = vld [vmem:[#allocation5 + $0x48] sm:$0xff]
      %v2172 = vld [vmem:[#allocation5 + $0x50] sm:$0xff]
      %v2173 = vld [vmem:[#allocation5 + $0x58] sm:$0xff]
      %v2174 = vld [vmem:[#allocation5 + $0x60] sm:$0xf]
      %v2175 = vld [vmem:[#allocation5 + $0x68] sm:$0xf]
      %v2176 = vld [vmem:[#allocation5 + $0x70] sm:$0xf]
      %v2177 = vld [vmem:[%s8] sm:$0xf]
      %2179 = vset.pattern.permute.xlu0 0
      %2180 = vperm.xlu0 %2179, %v2177
      %v2181 = vpop.permute.xlu0 %2180
      %vm2183 = vcmask 293888
      %v2185 = vsel %vm2183, %v2161, 0
      %v2188 = vsel %vm1388, %v2174, 0
      %v2191 = vsel %vm1388, %v2175, 0
      %v2194 = vsel %vm1388, %v2176, 0
      %2196 = vmatprep.subr.mxu0 %v2163
      %2197 = vmatpush1.msra.mxu0 %v2162
      %2198 = vmatprep.subr.mxu0 %v2166
      %2199 = vmatpush1.msra.mxu0 %v2165
      %2200 = vmatprep.subr.mxu0 %v2169
      %2201 = vmatpush1.msra.mxu0 %v2168
      %2202 = vmatprep.subr.mxu0 %v2172
      %2203 = vmatpush1.msra.mxu0 %v2171
      %2204 = vmatprep.subr.mxu0 %v2191
      %2205 = vmatpush1.msra.mxu0 %v2188
      %2206 = vmatprep.subr.mxu0 0.0
      %2207 = vmatpush1.msra.mxu0 0.0
      %2208 = vmatprep.subr.mxu0 0.0
      %2209 = vmatpush1.msra.mxu0 0.0
      %2210 = vmatprep.subr.mxu0 0.0
      %2211 = vmatpush1.msra.mxu0 0.0
      %2212 = vmatprep.subr.mxu0 0.0
      %2213 = vmatpush1.msra.mxu0 0.0
      %2214 = vmatprep.subr.mxu0 0.0
      %2215 = vmatpush1.msra.mxu0 0.0
      %2216 = vmatprep.subr.mxu0 0.0
      %2217 = vmatpush1.msra.mxu0 0.0
      %2218 = vmatprep.subr.mxu0 0.0
      %2219 = vmatpush1.msra.mxu0 0.0
      %2220 = vmatprep.subr.mxu0 0.0
      %2221 = vmatpush1.msra.mxu0 0.0
      %2222 = vmatprep.subr.mxu0 0.0
      %2223 = vmatpush1.msra.mxu0 0.0
      %2224 = vmatprep.subr.mxu0 0.0
      %2225 = vmatpush1.msra.mxu0 0.0
      %2226 = vmatprep.subr.mxu0 0.0
      %2227 = vmatpush1.msra.mxu0 0.0
      %2228 = vmatprep.subr.mxu0 0.0
      %2229 = vmatpush1.msra.mxu0 0.0
      %2230 = vmatprep.subr.mxu0 0.0
      %2231 = vmatpush1.msra.mxu0 0.0
      %2232 = vmatprep.subr.mxu0 0.0
      %2233 = vmatpush1.msra.mxu0 0.0
      %2234 = vmatprep.subr.mxu0 0.0
      %2235 = vmatpush1.msra.mxu0 0.0
      %2236 = vmatprep.subr.mxu0 0.0
      %2237 = vmatpush1.msra.mxu0 0.0
      %2238 = vmatprep.subr.mxu0 0.0
      %2239 = vmatpush1.msra.mxu0 0.0
      %2240 = vmatprep.subr.mxu0 0.0
      %2241 = vmatpush1.msra.mxu0 0.0
      %2242 = vmatprep.subr.mxu0 0.0
      %2243 = vmatpush1.msra.mxu0 0.0
      %2244 = vmatprep.subr.mxu0 0.0
      %2245 = vmatpush1.msra.mxu0 0.0
      %2246 = vmatprep.subr.mxu0 0.0
      %2247 = vmatpush1.msra.mxu0 0.0
      %2248 = vmatprep.subr.mxu0 0.0
      %2249 = vmatpush1.msra.mxu0 0.0
      %2250 = vmatprep.subr.mxu0 0.0
      %2251 = vmatpush1.msra.mxu0 0.0
      %2252 = vmatprep.subr.mxu0 0.0
      %2253 = vmatpush1.msra.mxu0 0.0
      %2254 = vmatprep.subr.mxu0 0.0
      %2255 = vmatpush1.msra.mxu0 0.0
      %2256 = vmatprep.subr.mxu0 0.0
      %2257 = vmatpush1.msra.mxu0 0.0
      %2258 = vmatprep.subr.mxu0 0.0
      %2259 = vmatpush1.msra.mxu0 0.0
      %2260 = vmatprep.mubr.f32.mxu0 0.0
      %2261 = vmatmul.mubr.f32.gmra.mrb[0].mxu0 %v2185
      %v2262 = vpop.f32.mrb[0].mxu0
      %v2263 = vadd.f32 %v2181, %v2262
      %v2264 = vpop.f32.mrb[0].mxu0
      %v2265 = vadd.f32 %v2181, %v2264
      %2266 = vdwg.mxu0
      %2267 = vmatprep.subr.mxu0 0.0
      %2268 = vmatpush1.msra.mxu0 %v2164
      %2269 = vmatprep.subr.mxu0 0.0
      %2270 = vmatpush1.msra.mxu0 %v2167
      %2271 = vmatprep.subr.mxu0 0.0
      %2272 = vmatpush1.msra.mxu0 %v2170
      %2273 = vmatprep.subr.mxu0 0.0
      %2274 = vmatpush1.msra.mxu0 %v2173
      %2275 = vmatprep.subr.mxu0 0.0
      %2276 = vmatpush1.msra.mxu0 %v2194
      %2277 = vmatprep.subr.mxu0 0.0
      %2278 = vmatpush1.msra.mxu0 0.0
      %2279 = vmatprep.subr.mxu0 0.0
      %2280 = vmatpush1.msra.mxu0 0.0
      %2281 = vmatprep.subr.mxu0 0.0
      %2282 = vmatpush1.msra.mxu0 0.0
      %2283 = vmatprep.subr.mxu0 0.0
      %2284 = vmatpush1.msra.mxu0 0.0
      %2285 = vmatprep.subr.mxu0 0.0
      %2286 = vmatpush1.msra.mxu0 0.0
      %2287 = vmatprep.subr.mxu0 0.0
      %2288 = vmatpush1.msra.mxu0 0.0
      %2289 = vmatprep.subr.mxu0 0.0
      %2290 = vmatpush1.msra.mxu0 0.0
      %2291 = vmatprep.subr.mxu0 0.0
      %2292 = vmatpush1.msra.mxu0 0.0
      %2293 = vmatprep.subr.mxu0 0.0
      %2294 = vmatpush1.msra.mxu0 0.0
      %2295 = vmatprep.subr.mxu0 0.0
      %2296 = vmatpush1.msra.mxu0 0.0
      %2297 = vmatprep.subr.mxu0 0.0
      %2298 = vmatpush1.msra.mxu0 0.0
      %2299 = vmatprep.subr.mxu0 0.0
      %2300 = vmatpush1.msra.mxu0 0.0
      %2301 = vmatprep.subr.mxu0 0.0
      %2302 = vmatpush1.msra.mxu0 0.0
      %2303 = vmatprep.subr.mxu0 0.0
      %2304 = vmatpush1.msra.mxu0 0.0
      %2305 = vmatprep.subr.mxu0 0.0
      %2306 = vmatpush1.msra.mxu0 0.0
      %2307 = vmatprep.subr.mxu0 0.0
      %2308 = vmatpush1.msra.mxu0 0.0
      %2309 = vmatprep.subr.mxu0 0.0
      %2310 = vmatpush1.msra.mxu0 0.0
      %2311 = vmatprep.subr.mxu0 0.0
      %2312 = vmatpush1.msra.mxu0 0.0
      %2313 = vmatprep.subr.mxu0 0.0
      %2314 = vmatpush1.msra.mxu0 0.0
      %2315 = vmatprep.subr.mxu0 0.0
      %2316 = vmatpush1.msra.mxu0 0.0
      %2317 = vmatprep.subr.mxu0 0.0
      %2318 = vmatpush1.msra.mxu0 0.0
      %2319 = vmatprep.subr.mxu0 0.0
      %2320 = vmatpush1.msra.mxu0 0.0
      %2321 = vmatprep.subr.mxu0 0.0
      %2322 = vmatpush1.msra.mxu0 0.0
      %2323 = vmatprep.subr.mxu0 0.0
      %2324 = vmatpush1.msra.mxu0 0.0
      %2325 = vmatprep.subr.mxu0 0.0
      %2326 = vmatpush1.msra.mxu0 0.0
      %2327 = vmatprep.subr.mxu0 0.0
      %2328 = vmatpush1.msra.mxu0 0.0
      %2329 = vmatprep.subr.mxu0 0.0
      %2330 = vmatpush1.msra.mxu0 0.0
      %2331 = vmatprep.mubr.f32.mxu0 0.0
      %2332 = vmatmul.mubr.f32.gmra.mrb[0].mxu0 %v2185
      %v2333 = vpop.f32.mrb[0].mxu0
      %v2334 = vadd.f32 %v2181, %v2333
      %v2335 = vpop.f32.mrb[0].mxu0
      %2336 = vdwg.mxu0
      %v2337 = vmax.f32 %v2263, 0.0
      %v2338 = vmax.f32 %v2265, 0.0
      %v2339 = vmax.f32 %v2334, 0.0
      %v2342 = vcombine.low %v2337, %v2338
      %2344 = vst [vmem:[%s352] sm:$0xff] %v2342
      %2345 = vst.msk [vmem:[%s352 + $0x8] sm:$0xf] %vm2002, %v2339
      %p2346 = scmp.lt.s32.totalorder %s20, 1
      %s2347 = scalar_select %p2346, %s20, 1
      %s2348 = smul.addr %s2347, 3
      %s2349 = smul.addr %s2348, 4
      %s2350 = scalar_lea.vmem %s9, %s2349
      // Predicated region
      $region57: #{up_block_forward.1} parent=55 // pred_check
        %p2351 = pneg %p237
      $region58: #{up_block_forward.1} parent=55 // pred_check_branch
        %2353 = sbr.rel (%p2351) target = $region60
      $region59: #{up_block_forward.1} parent=55 // pred_region
        _
      $region60: #{up_block_forward.1} parent=55 // pred_fallthru
        _
    $region56: #{up_block_forward.1} parent=5 // pred_fallthru
      _
    %p2354 = scmp.le.s32.totalorder 2, %s15
    // Predicated region
    $region61: #{up_block_forward.1} parent=5 // pred_check
      %p2355 = pneg %p2354
    $region62: #{up_block_forward.1} parent=5 // pred_check_branch
      %2357 = sbr.rel (%p2355) target = $region64
    $region63: #{up_block_forward.1} parent=5 // pred_region
      %s2358 = ssub.s32 %s15, 2
      // Predicated region
      $region65: #{up_block_forward.1} parent=63 // pred_check
        %p2359 = pneg %p243
      $region66: #{up_block_forward.1} parent=63 // pred_check_branch
        %2361 = sbr.rel (%p2359) target = $region68
      $region67: #{up_block_forward.1} parent=63 // pred_region
        %p2362 = scmp.lt.s32.totalorder %s21, 1
        %s2363 = scalar_select %p2362, %s21, 1
        %s2364 = smul.addr %s2363, 3
        %s2365 = smul.addr %s2364, 4
        %s2366 = scalar_lea.vmem %s9, %s2365
      $region68: #{up_block_forward.1} parent=63 // pred_fallthru
        _
    $region64: #{up_block_forward.1} parent=5 // pred_fallthru
      _
  $region6: #{up_block_forward.1} parent=0 // loop_footer
    %s19 = sadd.s32 1, %s15
  $region7: #{up_block_forward.1} parent=0 // loop_footer_branch
    %14 = sbr.rel target = $region3
  $region8: #{up_block_forward.1} parent=0 // loop_exit
    _

</llo_original>
